<compile_context>
chip_gen: v6e
topology: v6e:2x2x1
jax: 0.10.0
libtpu: 0.0.40
codegen_flags: <defaults>
</compile_context>

<pallas_src>
import functools

import jax
import jax.numpy as jnp
import numpy as np
from jax.experimental import pallas as pl
from jax.experimental.pallas import tpu as pltpu

BN_EPS = 1e-5


def cnn_block_forward(x_nchw, conv_w, conv_b, bn_gamma, bn_beta, kernel=3):
    """Forward pass of CNNBlock. x_nchw: [N, C_in, H, W] float32. Returns NCHW."""
    n, c_in, h, w = x_nchw.shape
    c_out = conv_w.shape[0]
    k = kernel
    pad = (k - 1) // 2
    hp, wp = h + 2 * pad, w + 2 * pad
    hw = h * w
    m = n * hw
    assert hw % 8 == 0, "H*W must be a multiple of 8 for (8,128) tiling"

    c_in_pad = ((c_in + 7) // 8) * 8           # per-tap channel slot (sublane friendly)
    c_out_pad = ((c_out + 127) // 128) * 128   # lane-dense output channels
    kk = k * k * c_in_pad                      # folded contraction length
    kk_pad = ((kk + 127) // 128) * 128         # pad contraction to full lanes

    # --- layout plumbing: ONE fused XLA copy (transpose + channel pad) --------
    # TODO(synk): in a full model keep activations NHWC (channels pre-padded)
    # between blocks so this transpose/pad and the final NCHW transpose vanish;
    # very large H/W would also want halo'd H-tile grid axis (v7x: 64 MiB VMEM).
    x_nhwc = jnp.pad(jnp.transpose(x_nchw, (0, 2, 3, 1)),
                     ((0, 0), (0, 0), (0, 0), (0, c_in_pad - c_in)))

    # Weight [C_out, C_in, K, K] -> folded [kk_pad, c_out_pad] bf16;
    # row index = (kh*k + kw) * c_in_pad + c.
    w_r = jnp.transpose(conv_w, (2, 3, 1, 0)).reshape(k * k, c_in, c_out)
    w_r = jnp.pad(w_r, ((0, 0), (0, c_in_pad - c_in), (0, c_out_pad - c_out)))
    w_mat = jnp.pad(w_r.reshape(kk, c_out_pad),
                    ((0, kk_pad - kk), (0, 0))).astype(jnp.bfloat16)

    b_row = jnp.pad(conv_b, (0, c_out_pad - c_out)).reshape(1, c_out_pad)
    g_row = jnp.pad(bn_gamma, (0, c_out_pad - c_out)).reshape(1, c_out_pad)
    bt_row = jnp.pad(bn_beta, (0, c_out_pad - c_out)).reshape(1, c_out_pad)

    inv_m = 1.0 / float(m)

    def fused_kernel(x_ref, w_ref, b_ref, g_ref, bt_ref, o_ref,
                     xpad_ref, col_ref, s1_ref, s2_ref):
        i = pl.program_id(0)

        # Init once: zero the halo borders / channel padding of the padded slab,
        # the padded tail columns of the im2col slab, and the stat accumulators.
        # Interiors are fully overwritten every step, so borders stay zero.
        @pl.when(i == 0)
        def _():
            xpad_ref[...] = jnp.zeros_like(xpad_ref)
            col_ref[...] = jnp.zeros_like(col_ref)
            s1_ref[...] = jnp.zeros_like(s1_ref)
            s2_ref[...] = jnp.zeros_like(s2_ref)

        # In-kernel spatial halo: copy this image into the interior of xpad.
        xpad_ref[pad:pad + h, pad:pad + w, :] = x_ref[0]

        # im2col in VMEM: concatenate the k*k shifted slabs along the contraction
        # (lane) axis -> one well-shaped MXU matmul instead of 9 small-K matmuls.
        for kh in range(k):
            for kw in range(k):
                t = kh * k + kw
                slab = xpad_ref[kh:kh + h, kw:kw + w, :]          # [h, w, c_in_pad]
                col_ref[:, t * c_in_pad:(t + 1) * c_in_pad] = slab.reshape(hw, c_in_pad)

        # Single bf16 MXU matmul with f32 accumulation + bias.
        y = jnp.dot(col_ref[...].astype(jnp.bfloat16), w_ref[...],
                    preferred_element_type=jnp.float32) + b_ref[...]

        o_ref[i] = y                                   # whole-batch y stays in VMEM
        s1_ref[...] += jnp.sum(y, axis=0, keepdims=True)
        s2_ref[...] += jnp.sum(y * y, axis=0, keepdims=True)

        # Finalize: train-mode BN affine + ReLU applied in place on the resident
        # output block; written back to HBM once, lane-dense (128-wide).
        @pl.when(i == pl.num_programs(0) - 1)
        def _():
            mean = s1_ref[...] * inv_m
            # NOTE: E[y^2]-mean^2 can cancel in f32 at large batch scale; fine here.
            var = jnp.maximum(s2_ref[...] * inv_m - mean * mean, 0.0)
            inv = jax.lax.rsqrt(var + BN_EPS)
            scale = g_ref[...] * inv                    # (1, c_out_pad)
            shift = bt_ref[...] - mean * scale
            o_ref[...] = jnp.maximum(o_ref[...] * scale + shift, 0.0)

    out3d = pl.pallas_call(
        fused_kernel,
        out_shape=jax.ShapeDtypeStruct((n, hw, c_out_pad), jnp.float32),
        grid=(n,),
        in_specs=[
            pl.BlockSpec((1, h, w, c_in_pad), lambda i: (i, 0, 0, 0)),
            pl.BlockSpec((kk_pad, c_out_pad), lambda i: (0, 0)),
            pl.BlockSpec((1, c_out_pad), lambda i: (0, 0)),
            pl.BlockSpec((1, c_out_pad), lambda i: (0, 0)),
            pl.BlockSpec((1, c_out_pad), lambda i: (0, 0)),
        ],
        # Output block is the whole batch -> resident in VMEM across the grid
        # (accumulator pattern), so the grid axis must be "arbitrary".
        out_specs=pl.BlockSpec((n, hw, c_out_pad), lambda i: (0, 0, 0)),
        scratch_shapes=[
            pltpu.VMEM((hp, wp, c_in_pad), jnp.float32),   # zero-bordered padded slab
            pltpu.VMEM((hw, kk_pad), jnp.float32),         # im2col slab (tail cols zero)
            pltpu.VMEM((1, c_out_pad), jnp.float32),       # sum(y) per channel
            pltpu.VMEM((1, c_out_pad), jnp.float32),       # sum(y*y) per channel
        ],
        # TODO(synk): on v7x, split batch/H-tiles across the 2 TensorCores and
        # combine s1/s2 via VMEM_SHARED/CMEM to keep megacore parallelism.
        compiler_params=pltpu.CompilerParams(dimension_semantics=("arbitrary",)),
    )(x_nhwc, w_mat, b_row, g_row, bt_row)

    # One fused XLA copy back to the module's NCHW contract.
    out_nhwc = out3d[:, :, :c_out].reshape(n, h, w, c_out)
    return jnp.transpose(out_nhwc, (0, 3, 1, 2))


def _reference_forward(x_nchw, conv_w, conv_b, bn_gamma, bn_beta):
    # Pure-JAX f32 reference (lax.conv + train-mode batchnorm + relu).
    y = jax.lax.conv_general_dilated(
        x_nchw, conv_w, window_strides=(1, 1), padding="SAME",
        dimension_numbers=("NCHW", "OIHW", "NCHW"))
    y = y + conv_b.reshape(1, -1, 1, 1)
    mean = jnp.mean(y, axis=(0, 2, 3), keepdims=True)
    var = jnp.mean((y - mean) ** 2, axis=(0, 2, 3), keepdims=True)
    y = (y - mean) * jax.lax.rsqrt(var + BN_EPS)
    y = y * bn_gamma.reshape(1, -1, 1, 1) + bn_beta.reshape(1, -1, 1, 1)
    return jnp.maximum(y, 0.0)


if __name__ == "__main__":
    # Small shapes consistent with the module: N=2, C_in=4, H=W=16, C_out=8, K=3.
    N, C_IN, H, W = 2, 4, 16, 16
    C_OUT, K = 8, 3

    key = jax.random.PRNGKey(0)
    k_w, k_b, k_g, k_x = jax.random.split(key, 4)

    # Conv2d weight: kaiming_normal_(mode='fan_out', nonlinearity='relu')
    fan_out = C_OUT * K * K
    conv_w = jax.random.normal(k_w, (C_OUT, C_IN, K, K), jnp.float32) * np.sqrt(2.0 / fan_out)
    # Conv2d bias: PyTorch default uniform(-1/sqrt(fan_in), 1/sqrt(fan_in))
    fan_in = C_IN * K * K
    bound = 1.0 / np.sqrt(fan_in)
    conv_b = jax.random.uniform(k_b, (C_OUT,), jnp.float32, -bound, bound)
    # BatchNorm2d: weight ~ N(1.0, 0.02), bias = 0
    bn_gamma = 1.0 + 0.02 * jax.random.normal(k_g, (C_OUT,), jnp.float32)
    bn_beta = jnp.zeros((C_OUT,), jnp.float32)

    x = jax.random.normal(k_x, (N, C_IN, H, W), jnp.float32)

    fwd = jax.jit(functools.partial(cnn_block_forward, kernel=K))
    out = jax.block_until_ready(fwd(x, conv_w, conv_b, bn_gamma, bn_beta))

    ref = jax.block_until_ready(_reference_forward(x, conv_w, conv_b, bn_gamma, bn_beta))
    # Tolerance loosened vs f32-only version: conv matmul inputs are bf16
    # (f32 accumulation; bias/stats/BN math stay f32).
    np.testing.assert_allclose(np.asarray(out), np.asarray(ref), rtol=2e-2, atol=3e-2)

    print("KERNEL_OK")
</pallas_src>

<mosaic_0001>
module attributes {stable_mosaic.version = 11 : i64} {
  func.func @fused_kernel(%arg0: i32, %arg1: memref<1x16x16x8xf32, #tpu.memory_space<vmem>>, %arg2: memref<128x128xbf16, #tpu.memory_space<vmem>>, %arg3: memref<1x128xf32, #tpu.memory_space<vmem>>, %arg4: memref<1x128xf32, #tpu.memory_space<vmem>>, %arg5: memref<1x128xf32, #tpu.memory_space<vmem>>, %arg6: memref<2x256x128xf32, #tpu.memory_space<vmem>>, %arg7: memref<18x18x8xf32, #tpu.memory_space<vmem>>, %arg8: memref<256x128xf32, #tpu.memory_space<vmem>>, %arg9: memref<1x128xf32, #tpu.memory_space<vmem>>, %arg10: memref<1x128xf32, #tpu.memory_space<vmem>>) attributes {dimension_semantics = [#tpu.dimension_semantics<arbitrary>], iteration_bounds = array<i64: 2>, scalar_prefetch = 0 : i64, scratch_operands = 4 : i64, tpu.core_type = #tpu.core_type<tc>, window_params = [{transform_indices = @transform_0, window_bounds = array<i64: 1, 16, 16, 8>}, {pipeline_mode = #tpu.pipeline_mode<synchronous>, transform_indices = @transform_1, window_bounds = array<i64: 128, 128>}, {pipeline_mode = #tpu.pipeline_mode<synchronous>, transform_indices = @transform_2, window_bounds = array<i64: 1, 128>}, {pipeline_mode = #tpu.pipeline_mode<synchronous>, transform_indices = @transform_3, window_bounds = array<i64: 1, 128>}, {pipeline_mode = #tpu.pipeline_mode<synchronous>, transform_indices = @transform_4, window_bounds = array<i64: 1, 128>}, {pipeline_mode = #tpu.pipeline_mode<synchronous>, transform_indices = @transform_5, window_bounds = array<i64: 2, 256, 128>}]} {
    %c0_i32 = arith.constant 0 : i32
    %0 = arith.cmpi eq, %arg0, %c0_i32 : i32
    %1 = arith.extui %0 : i1 to i32
    %c0_i32_0 = arith.constant 0 : i32
    %2 = arith.cmpi ne, %1, %c0_i32_0 : i32
    scf.if %2 {
      %cst_61 = arith.constant 0.000000e+00 : f32
      %58 = vector.broadcast %cst_61 : f32 to vector<18x18x8xf32>
      %c0_62 = arith.constant 0 : index
      %c0_63 = arith.constant 0 : index
      %c0_64 = arith.constant 0 : index
      %59 = vector.load %arg7[%c0_62, %c0_63, %c0_64] : memref<18x18x8xf32, #tpu.memory_space<vmem>>, vector<18x18x8xf32>
      tpu.vector_store %arg7[%c0_62, %c0_63, %c0_64], %58 {strides = array<i32>} : memref<18x18x8xf32, #tpu.memory_space<vmem>>, vector<18x18x8xf32>,
      %cst_65 = arith.constant 0.000000e+00 : f32
      %60 = vector.broadcast %cst_65 : f32 to vector<256x128xf32>
      %c0_66 = arith.constant 0 : index
      %c0_67 = arith.constant 0 : index
      %61 = vector.load %arg8[%c0_66, %c0_67] : memref<256x128xf32, #tpu.memory_space<vmem>>, vector<256x128xf32>
      tpu.vector_store %arg8[%c0_66, %c0_67], %60 {strides = array<i32>} : memref<256x128xf32, #tpu.memory_space<vmem>>, vector<256x128xf32>,
      %cst_68 = arith.constant 0.000000e+00 : f32
      %62 = vector.broadcast %cst_68 : f32 to vector<1x128xf32>
      %c0_69 = arith.constant 0 : index
      %c0_70 = arith.constant 0 : index
      %63 = vector.load %arg9[%c0_69, %c0_70] : memref<1x128xf32, #tpu.memory_space<vmem>>, vector<1x128xf32>
      tpu.vector_store %arg9[%c0_69, %c0_70], %62 {strides = array<i32>} : memref<1x128xf32, #tpu.memory_space<vmem>>, vector<1x128xf32>,
      %cst_71 = arith.constant 0.000000e+00 : f32
      %64 = vector.broadcast %cst_71 : f32 to vector<1x128xf32>
      %c0_72 = arith.constant 0 : index
      %c0_73 = arith.constant 0 : index
      %65 = vector.load %arg10[%c0_72, %c0_73] : memref<1x128xf32, #tpu.memory_space<vmem>>, vector<1x128xf32>
      tpu.vector_store %arg10[%c0_72, %c0_73], %64 {strides = array<i32>} : memref<1x128xf32, #tpu.memory_space<vmem>>, vector<1x128xf32>,
    } else {
    }
    %c0 = arith.constant 0 : index
    %c0_1 = arith.constant 0 : index
    %c0_2 = arith.constant 0 : index
    %c0_3 = arith.constant 0 : index
    %3 = vector.load %arg1[%c0, %c0_1, %c0_2, %c0_3] : memref<1x16x16x8xf32, #tpu.memory_space<vmem>>, vector<1x16x16x8xf32>
    %4 = vector.shape_cast %3 : vector<1x16x16x8xf32> to vector<16x16x8xf32>
    %c1 = arith.constant 1 : index
    %c1_4 = arith.constant 1 : index
    %c0_5 = arith.constant 0 : index
    %5 = vector.load %arg7[%c1, %c1_4, %c0_5] : memref<18x18x8xf32, #tpu.memory_space<vmem>>, vector<16x16x8xf32>
    tpu.vector_store %arg7[%c1, %c1_4, %c0_5], %4 {strides = array<i32>} : memref<18x18x8xf32, #tpu.memory_space<vmem>>, vector<16x16x8xf32>,
    %c0_6 = arith.constant 0 : index
    %c0_7 = arith.constant 0 : index
    %c0_8 = arith.constant 0 : index
    %6 = vector.load %arg7[%c0_6, %c0_7, %c0_8] : memref<18x18x8xf32, #tpu.memory_space<vmem>>, vector<16x16x8xf32>
    %7 = vector.shape_cast %6 : vector<16x16x8xf32> to vector<256x8xf32>
    %c0_9 = arith.constant 0 : index
    %c0_10 = arith.constant 0 : index
    %8 = vector.load %arg8[%c0_9, %c0_10] : memref<256x128xf32, #tpu.memory_space<vmem>>, vector<256x8xf32>
    tpu.vector_store %arg8[%c0_9, %c0_10], %7 {strides = array<i32>} : memref<256x128xf32, #tpu.memory_space<vmem>>, vector<256x8xf32>,
    %c0_11 = arith.constant 0 : index
    %c1_12 = arith.constant 1 : index
    %c0_13 = arith.constant 0 : index
    %9 = vector.load %arg7[%c0_11, %c1_12, %c0_13] : memref<18x18x8xf32, #tpu.memory_space<vmem>>, vector<16x16x8xf32>
    %10 = vector.shape_cast %9 : vector<16x16x8xf32> to vector<256x8xf32>
    %c0_14 = arith.constant 0 : index
    %c8 = arith.constant 8 : index
    %11 = vector.load %arg8[%c0_14, %c8] : memref<256x128xf32, #tpu.memory_space<vmem>>, vector<256x8xf32>
    tpu.vector_store %arg8[%c0_14, %c8], %10 {strides = array<i32>} : memref<256x128xf32, #tpu.memory_space<vmem>>, vector<256x8xf32>,
    %c0_15 = arith.constant 0 : index
    %c2 = arith.constant 2 : index
    %c0_16 = arith.constant 0 : index
    %12 = vector.load %arg7[%c0_15, %c2, %c0_16] : memref<18x18x8xf32, #tpu.memory_space<vmem>>, vector<16x16x8xf32>
    %13 = vector.shape_cast %12 : vector<16x16x8xf32> to vector<256x8xf32>
    %c0_17 = arith.constant 0 : index
    %c16 = arith.constant 16 : index
    %14 = vector.load %arg8[%c0_17, %c16] : memref<256x128xf32, #tpu.memory_space<vmem>>, vector<256x8xf32>
    tpu.vector_store %arg8[%c0_17, %c16], %13 {strides = array<i32>} : memref<256x128xf32, #tpu.memory_space<vmem>>, vector<256x8xf32>,
    %c1_18 = arith.constant 1 : index
    %c0_19 = arith.constant 0 : index
    %c0_20 = arith.constant 0 : index
    %15 = vector.load %arg7[%c1_18, %c0_19, %c0_20] : memref<18x18x8xf32, #tpu.memory_space<vmem>>, vector<16x16x8xf32>
    %16 = vector.shape_cast %15 : vector<16x16x8xf32> to vector<256x8xf32>
    %c0_21 = arith.constant 0 : index
    %c24 = arith.constant 24 : index
    %17 = vector.load %arg8[%c0_21, %c24] : memref<256x128xf32, #tpu.memory_space<vmem>>, vector<256x8xf32>
    tpu.vector_store %arg8[%c0_21, %c24], %16 {strides = array<i32>} : memref<256x128xf32, #tpu.memory_space<vmem>>, vector<256x8xf32>,
    %c1_22 = arith.constant 1 : index
    %c1_23 = arith.constant 1 : index
    %c0_24 = arith.constant 0 : index
    %18 = vector.load %arg7[%c1_22, %c1_23, %c0_24] : memref<18x18x8xf32, #tpu.memory_space<vmem>>, vector<16x16x8xf32>
    %19 = vector.shape_cast %18 : vector<16x16x8xf32> to vector<256x8xf32>
    %c0_25 = arith.constant 0 : index
    %c32 = arith.constant 32 : index
    %20 = vector.load %arg8[%c0_25, %c32] : memref<256x128xf32, #tpu.memory_space<vmem>>, vector<256x8xf32>
    tpu.vector_store %arg8[%c0_25, %c32], %19 {strides = array<i32>} : memref<256x128xf32, #tpu.memory_space<vmem>>, vector<256x8xf32>,
    %c1_26 = arith.constant 1 : index
    %c2_27 = arith.constant 2 : index
    %c0_28 = arith.constant 0 : index
    %21 = vector.load %arg7[%c1_26, %c2_27, %c0_28] : memref<18x18x8xf32, #tpu.memory_space<vmem>>, vector<16x16x8xf32>
    %22 = vector.shape_cast %21 : vector<16x16x8xf32> to vector<256x8xf32>
    %c0_29 = arith.constant 0 : index
    %c40 = arith.constant 40 : index
    %23 = vector.load %arg8[%c0_29, %c40] : memref<256x128xf32, #tpu.memory_space<vmem>>, vector<256x8xf32>
    tpu.vector_store %arg8[%c0_29, %c40], %22 {strides = array<i32>} : memref<256x128xf32, #tpu.memory_space<vmem>>, vector<256x8xf32>,
    %c2_30 = arith.constant 2 : index
    %c0_31 = arith.constant 0 : index
    %c0_32 = arith.constant 0 : index
    %24 = vector.load %arg7[%c2_30, %c0_31, %c0_32] : memref<18x18x8xf32, #tpu.memory_space<vmem>>, vector<16x16x8xf32>
    %25 = vector.shape_cast %24 : vector<16x16x8xf32> to vector<256x8xf32>
    %c0_33 = arith.constant 0 : index
    %c48 = arith.constant 48 : index
    %26 = vector.load %arg8[%c0_33, %c48] : memref<256x128xf32, #tpu.memory_space<vmem>>, vector<256x8xf32>
    tpu.vector_store %arg8[%c0_33, %c48], %25 {strides = array<i32>} : memref<256x128xf32, #tpu.memory_space<vmem>>, vector<256x8xf32>,
    %c2_34 = arith.constant 2 : index
    %c1_35 = arith.constant 1 : index
    %c0_36 = arith.constant 0 : index
    %27 = vector.load %arg7[%c2_34, %c1_35, %c0_36] : memref<18x18x8xf32, #tpu.memory_space<vmem>>, vector<16x16x8xf32>
    %28 = vector.shape_cast %27 : vector<16x16x8xf32> to vector<256x8xf32>
    %c0_37 = arith.constant 0 : index
    %c56 = arith.constant 56 : index
    %29 = vector.load %arg8[%c0_37, %c56] : memref<256x128xf32, #tpu.memory_space<vmem>>, vector<256x8xf32>
    tpu.vector_store %arg8[%c0_37, %c56], %28 {strides = array<i32>} : memref<256x128xf32, #tpu.memory_space<vmem>>, vector<256x8xf32>,
    %c2_38 = arith.constant 2 : index
    %c2_39 = arith.constant 2 : index
    %c0_40 = arith.constant 0 : index
    %30 = vector.load %arg7[%c2_38, %c2_39, %c0_40] : memref<18x18x8xf32, #tpu.memory_space<vmem>>, vector<16x16x8xf32>
    %31 = vector.shape_cast %30 : vector<16x16x8xf32> to vector<256x8xf32>
    %c0_41 = arith.constant 0 : index
    %c64 = arith.constant 64 : index
    %32 = vector.load %arg8[%c0_41, %c64] : memref<256x128xf32, #tpu.memory_space<vmem>>, vector<256x8xf32>
    tpu.vector_store %arg8[%c0_41, %c64], %31 {strides = array<i32>} : memref<256x128xf32, #tpu.memory_space<vmem>>, vector<256x8xf32>,
    %c0_42 = arith.constant 0 : index
    %c0_43 = arith.constant 0 : index
    %33 = vector.load %arg8[%c0_42, %c0_43] : memref<256x128xf32, #tpu.memory_space<vmem>>, vector<256x128xf32>
    %34 = arith.truncf %33 : vector<256x128xf32> to vector<256x128xbf16>
    %c0_44 = arith.constant 0 : index
    %c0_45 = arith.constant 0 : index
    %35 = vector.load %arg2[%c0_44, %c0_45] : memref<128x128xbf16, #tpu.memory_space<vmem>>, vector<128x128xbf16>
    %cst = arith.constant dense<0.000000e+00> : vector<256x128xf32>
    %36 = tpu.matmul %34, %35, %cst {dimension_numbers = #tpu.dot_dimension_numbers<[1], [0], [0], [1], [0, 0, 1, 1], [], []>} : vector<256x128xbf16>, vector<128x128xbf16>, vector<256x128xf32> -> vector<256x128xf32>
    %c0_46 = arith.constant 0 : index
    %c0_47 = arith.constant 0 : index
    %37 = vector.load %arg3[%c0_46, %c0_47] : memref<1x128xf32, #tpu.memory_space<vmem>>, vector<1x128xf32>
    %38 = vector.broadcast %37 : vector<1x128xf32> to vector<256x128xf32>
    %39 = arith.addf %36, %38 : vector<256x128xf32>
    %40 = arith.index_cast %arg0 : i32 to index
    %c0_48 = arith.constant 0 : index
    %c0_49 = arith.constant 0 : index
    %41 = vector.load %arg6[%40, %c0_48, %c0_49] : memref<2x256x128xf32, #tpu.memory_space<vmem>>, vector<1x256x128xf32>
    %42 = vector.shape_cast %41 : vector<1x256x128xf32> to vector<256x128xf32>
    %43 = vector.shape_cast %39 : vector<256x128xf32> to vector<1x256x128xf32>
    tpu.vector_store %arg6[%40, %c0_48, %c0_49], %43 {strides = array<i32>} : memref<2x256x128xf32, #tpu.memory_space<vmem>>, vector<1x256x128xf32>,
    %c0_50 = arith.constant 0 : index
    %c0_51 = arith.constant 0 : index
    %44 = vector.load %arg9[%c0_50, %c0_51] : memref<1x128xf32, #tpu.memory_space<vmem>>, vector<1x128xf32>
    %cst_52 = arith.constant dense<0.000000e+00> : vector<128xf32>
    %45 = vector.multi_reduction <add>, %39, %cst_52 [0] : vector<256x128xf32> to vector<128xf32>
    %46 = vector.shape_cast %45 : vector<128xf32> to vector<1x128xf32>
    %47 = arith.addf %44, %46 : vector<1x128xf32>
    %c0_53 = arith.constant 0 : index
    %c0_54 = arith.constant 0 : index
    %48 = vector.load %arg9[%c0_53, %c0_54] : memref<1x128xf32, #tpu.memory_space<vmem>>, vector<1x128xf32>
    tpu.vector_store %arg9[%c0_53, %c0_54], %47 {strides = array<i32>} : memref<1x128xf32, #tpu.memory_space<vmem>>, vector<1x128xf32>,
    %c0_55 = arith.constant 0 : index
    %c0_56 = arith.constant 0 : index
    %49 = vector.load %arg10[%c0_55, %c0_56] : memref<1x128xf32, #tpu.memory_space<vmem>>, vector<1x128xf32>
    %50 = arith.mulf %39, %39 : vector<256x128xf32>
    %cst_57 = arith.constant dense<0.000000e+00> : vector<128xf32>
    %51 = vector.multi_reduction <add>, %50, %cst_57 [0] : vector<256x128xf32> to vector<128xf32>
    %52 = vector.shape_cast %51 : vector<128xf32> to vector<1x128xf32>
    %53 = arith.addf %49, %52 : vector<1x128xf32>
    %c0_58 = arith.constant 0 : index
    %c0_59 = arith.constant 0 : index
    %54 = vector.load %arg10[%c0_58, %c0_59] : memref<1x128xf32, #tpu.memory_space<vmem>>, vector<1x128xf32>
    tpu.vector_store %arg10[%c0_58, %c0_59], %53 {strides = array<i32>} : memref<1x128xf32, #tpu.memory_space<vmem>>, vector<1x128xf32>,
    %c1_i32 = arith.constant 1 : i32
    %55 = arith.cmpi eq, %arg0, %c1_i32 : i32
    %56 = arith.extui %55 : i1 to i32
    %c0_i32_60 = arith.constant 0 : i32
    %57 = arith.cmpi ne, %56, %c0_i32_60 : i32
    scf.if %57 {
      %c0_61 = arith.constant 0 : index
      %c0_62 = arith.constant 0 : index
      %58 = vector.load %arg9[%c0_61, %c0_62] : memref<1x128xf32, #tpu.memory_space<vmem>>, vector<1x128xf32>
      %cst_63 = arith.constant 0.001953125 : f32
      %59 = vector.broadcast %cst_63 : f32 to vector<1x128xf32>
      %60 = arith.mulf %58, %59 : vector<1x128xf32>
      %c0_64 = arith.constant 0 : index
      %c0_65 = arith.constant 0 : index
      %61 = vector.load %arg10[%c0_64, %c0_65] : memref<1x128xf32, #tpu.memory_space<vmem>>, vector<1x128xf32>
      %cst_66 = arith.constant 0.001953125 : f32
      %62 = vector.broadcast %cst_66 : f32 to vector<1x128xf32>
      %63 = arith.mulf %61, %62 : vector<1x128xf32>
      %64 = arith.mulf %60, %60 : vector<1x128xf32>
      %65 = arith.subf %63, %64 : vector<1x128xf32>
      %cst_67 = arith.constant 0.000000e+00 : f32
      %66 = vector.broadcast %cst_67 : f32 to vector<1x128xf32>
      %67 = arith.maximumf %65, %66 : vector<1x128xf32>
      %cst_68 = arith.constant 9.99999974E-6 : f32
      %68 = vector.broadcast %cst_68 : f32 to vector<1x128xf32>
      %69 = arith.addf %67, %68 : vector<1x128xf32>
      %70 = math.rsqrt %69 : vector<1x128xf32>
      %c0_69 = arith.constant 0 : index
      %c0_70 = arith.constant 0 : index
      %71 = vector.load %arg4[%c0_69, %c0_70] : memref<1x128xf32, #tpu.memory_space<vmem>>, vector<1x128xf32>
      %72 = arith.mulf %71, %70 : vector<1x128xf32>
      %c0_71 = arith.constant 0 : index
      %c0_72 = arith.constant 0 : index
      %73 = vector.load %arg5[%c0_71, %c0_72] : memref<1x128xf32, #tpu.memory_space<vmem>>, vector<1x128xf32>
      %74 = arith.mulf %60, %72 : vector<1x128xf32>
      %75 = arith.subf %73, %74 : vector<1x128xf32>
      %c0_73 = arith.constant 0 : index
      %c0_74 = arith.constant 0 : index
      %c0_75 = arith.constant 0 : index
      %76 = vector.load %arg6[%c0_73, %c0_74, %c0_75] : memref<2x256x128xf32, #tpu.memory_space<vmem>>, vector<2x256x128xf32>
      %77 = vector.shape_cast %72 : vector<1x128xf32> to vector<1x1x128xf32>
      %78 = vector.broadcast %77 : vector<1x1x128xf32> to vector<2x256x128xf32>
      %79 = arith.mulf %76, %78 : vector<2x256x128xf32>
      %80 = vector.shape_cast %75 : vector<1x128xf32> to vector<1x1x128xf32>
      %81 = vector.broadcast %80 : vector<1x1x128xf32> to vector<2x256x128xf32>
      %82 = arith.addf %79, %81 : vector<2x256x128xf32>
      %cst_76 = arith.constant 0.000000e+00 : f32
      %83 = vector.broadcast %cst_76 : f32 to vector<2x256x128xf32>
      %84 = arith.maximumf %82, %83 : vector<2x256x128xf32>
      %c0_77 = arith.constant 0 : index
      %c0_78 = arith.constant 0 : index
      %c0_79 = arith.constant 0 : index
      %85 = vector.load %arg6[%c0_77, %c0_78, %c0_79] : memref<2x256x128xf32, #tpu.memory_space<vmem>>, vector<2x256x128xf32>
      tpu.vector_store %arg6[%c0_77, %c0_78, %c0_79], %84 {strides = array<i32>} : memref<2x256x128xf32, #tpu.memory_space<vmem>>, vector<2x256x128xf32>,
    } else {
    }
    return
  }
  func.func @transform_0(%arg0: i32) -> (i32, i32, i32, i32) {
    %c0_i32 = arith.constant 0 : i32
    %c0_i32_0 = arith.constant 0 : i32
    %c0_i32_1 = arith.constant 0 : i32
    %c0_i32_2 = arith.constant 0 : i32
    return %arg0, %c0_i32, %c0_i32_0, %c0_i32_1 : i32, i32, i32, i32
  }
  func.func @transform_1(%arg0: i32) -> (i32, i32) {
    %c0_i32 = arith.constant 0 : i32
    %c0_i32_0 = arith.constant 0 : i32
    %c0_i32_1 = arith.constant 0 : i32
    return %c0_i32, %c0_i32_0 : i32, i32
  }
  func.func @transform_2(%arg0: i32) -> (i32, i32) {
    %c0_i32 = arith.constant 0 : i32
    %c0_i32_0 = arith.constant 0 : i32
    %c0_i32_1 = arith.constant 0 : i32
    return %c0_i32, %c0_i32_0 : i32, i32
  }
  func.func @transform_3(%arg0: i32) -> (i32, i32) {
    %c0_i32 = arith.constant 0 : i32
    %c0_i32_0 = arith.constant 0 : i32
    %c0_i32_1 = arith.constant 0 : i32
    return %c0_i32, %c0_i32_0 : i32, i32
  }
  func.func @transform_4(%arg0: i32) -> (i32, i32) {
    %c0_i32 = arith.constant 0 : i32
    %c0_i32_0 = arith.constant 0 : i32
    %c0_i32_1 = arith.constant 0 : i32
    return %c0_i32, %c0_i32_0 : i32, i32
  }
  func.func @transform_5(%arg0: i32) -> (i32, i32, i32) {
    %c0_i32 = arith.constant 0 : i32
    %c0_i32_0 = arith.constant 0 : i32
    %c0_i32_1 = arith.constant 0 : i32
    %c0_i32_2 = arith.constant 0 : i32
    return %c0_i32, %c0_i32_0, %c0_i32_1 : i32, i32, i32
  }
}

</mosaic_0001>

<llo_original>
// kernel: cnn_block_forward.1
$region0: #{cnn_block_forward.1}
  #allocation0 [shape = 'u32[]', space=smem, size = 0x4, offset = 0x4, fixed_abs, tag = 'smem constant byte address 0x4 - core index']
  #allocation1 [shape = 'u32[144,128]{1,0:T(1,128)}', space=vmem, size = 0x12000, scoped, tag = 'internal scratch']
  #allocation2 [shape = 'f32[18,18,8]{2,1,0:T(8,128)}', space=vmem, size = 0x36000, scoped, tag = 'scratch operand']
  #allocation3 [shape = 'f32[256,128]{1,0:T(8,128)}', space=vmem, size = 0x20000, scoped, tag = 'scratch operand']
  #allocation4 [shape = 'f32[1,128]{1,0:T(1,128)}', space=vmem, size = 0x200, scoped, tag = 'scratch operand']
  #allocation5 [shape = 'f32[1,128]{1,0:T(1,128)}', space=vmem, size = 0x200, scoped, tag = 'scratch operand']
  %s0 = inlined_call_operand.vmem [shape: f32[2,16,16,8], index: 0, kind: input, shape index: {}]
  %s1 = inlined_call_operand.vmem [shape: bf16[128,128], index: 1, kind: input, shape index: {}]
  %s2 = inlined_call_operand.vmem [shape: f32[1,128], index: 2, kind: input, shape index: {}]
  %s3 = inlined_call_operand.vmem [shape: f32[1,128], index: 3, kind: input, shape index: {}]
  %s4 = inlined_call_operand.vmem [shape: f32[1,128], index: 4, kind: input, shape index: {}]
  %s5 = inlined_call_operand.vmem [shape: f32[2,256,128], index: 5, kind: output, shape index: {}]
  %s6 = sld [smem:[#allocation0]]
  $region61: #{cnn_block_forward.1} parent=0
    _
  %s8 = ssub.s32 1, %s6
  %s9 = scalar_select 0, %s8, %s6
  loop: start=0, step=1, limit=4
  $region2: #{cnn_block_forward.1} parent=0 // loop_pre_header
    _
  $region3: #{cnn_block_forward.1} parent=0 // loop_header
    %s11 = sphi 0, %s15
    %p12 = scmp.ge.s32.totalorder %s11, 4
    %s21 = sphi 0, %s23
    %s24 = sphi 0, %s21
    %s25 = sphi 0, %s24
    %s41 = sphi 0, %s25
    %s45 = sphi 0, %s45
    %s47 = sphi 0, %s45
    %s48 = sphi 0, %s47
    %s62 = sphi 0, %s48
    %s66 = sphi 0, %s66
    %s68 = sphi 0, %s66
    %s69 = sphi 0, %s68
    %s83 = sphi 0, %s69
    %s87 = sphi 0, %s87
    %s89 = sphi 0, %s87
    %s90 = sphi 0, %s89
    %s104 = sphi 0, %s90
    %s108 = sphi 0, %s108
    %s110 = sphi 0, %s108
    %s111 = sphi 0, %s110
    %s125 = sphi 0, %s111
    %s129 = sphi 0, %s129
    %s131 = sphi 0, %s129
    %s132 = sphi 0, %s131
    %s146 = sphi 0, %s132
  $region4: #{cnn_block_forward.1} parent=0 // loop_header_branch
    %14 = sbr.rel (%p12) target = $region8
  $region5: #{cnn_block_forward.1} parent=0 // loop_body
    %s16 = ssub.s32 %s11, 1
    %s17 = ssub.s32 %s11, 2
    %s18 = sadd.s32 %s11, 1
    %s19 = ssub.s32 %s11, %s18
    %p20 = scmp.eq.s32.totalorder %s19, 0
    %s22 = sadd.s32 %s21, 1
    %s23 = scalar_select %p20, %s21, %s22
    %p26 = pneg %p20
    %p27 = scmp.eq.s32.totalorder %s11, 1
    %p28 = por %p26, %p27
    %p29 = scmp.ne.s32.totalorder %s21, %s24
    %p30 = scmp.eq.s32.totalorder %s11, 0
    %p31 = por %p29, %p30
    %p32 = scmp.ne.s32.totalorder %s21, %s24
    %p33 = scmp.eq.s32.totalorder %s16, 1
    %p34 = por %p32, %p33
    %p35 = scmp.ne.s32.totalorder %s24, %s25
    %p36 = scmp.eq.s32.totalorder %s16, 0
    %p37 = por %p35, %p36
    %p38 = scmp.ne.s32.totalorder %s24, %s25
    %p39 = scmp.eq.s32.totalorder %s17, 1
    %p40 = por %p38, %p39
    %p42 = scmp.ne.s32.totalorder %s25, %s41
    %p43 = scmp.eq.s32.totalorder %s17, 0
    %p44 = por %p42, %p43
    %s46 = sadd.s32 %s45, 1
    %p49 = scmp.eq.s32.totalorder %s11, 1
    %p50 = scmp.ne.s32.totalorder %s45, %s47
    %p51 = scmp.eq.s32.totalorder %s11, 0
    %p52 = por %p50, %p51
    %p53 = scmp.ne.s32.totalorder %s45, %s47
    %p54 = scmp.eq.s32.totalorder %s16, 1
    %p55 = por %p53, %p54
    %p56 = scmp.ne.s32.totalorder %s47, %s48
    %p57 = scmp.eq.s32.totalorder %s16, 0
    %p58 = por %p56, %p57
    %p59 = scmp.ne.s32.totalorder %s47, %s48
    %p60 = scmp.eq.s32.totalorder %s17, 1
    %p61 = por %p59, %p60
    %p63 = scmp.ne.s32.totalorder %s48, %s62
    %p64 = scmp.eq.s32.totalorder %s17, 0
    %p65 = por %p63, %p64
    %s67 = sadd.s32 %s66, 1
    %p70 = scmp.eq.s32.totalorder %s11, 1
    %p71 = scmp.ne.s32.totalorder %s66, %s68
    %p72 = scmp.eq.s32.totalorder %s11, 0
    %p73 = por %p71, %p72
    %p74 = scmp.ne.s32.totalorder %s66, %s68
    %p75 = scmp.eq.s32.totalorder %s16, 1
    %p76 = por %p74, %p75
    %p77 = scmp.ne.s32.totalorder %s68, %s69
    %p78 = scmp.eq.s32.totalorder %s16, 0
    %p79 = por %p77, %p78
    %p80 = scmp.ne.s32.totalorder %s68, %s69
    %p81 = scmp.eq.s32.totalorder %s17, 1
    %p82 = por %p80, %p81
    %p84 = scmp.ne.s32.totalorder %s69, %s83
    %p85 = scmp.eq.s32.totalorder %s17, 0
    %p86 = por %p84, %p85
    %s88 = sadd.s32 %s87, 1
    %p91 = scmp.eq.s32.totalorder %s11, 1
    %p92 = scmp.ne.s32.totalorder %s87, %s89
    %p93 = scmp.eq.s32.totalorder %s11, 0
    %p94 = por %p92, %p93
    %p95 = scmp.ne.s32.totalorder %s87, %s89
    %p96 = scmp.eq.s32.totalorder %s16, 1
    %p97 = por %p95, %p96
    %p98 = scmp.ne.s32.totalorder %s89, %s90
    %p99 = scmp.eq.s32.totalorder %s16, 0
    %p100 = por %p98, %p99
    %p101 = scmp.ne.s32.totalorder %s89, %s90
    %p102 = scmp.eq.s32.totalorder %s17, 1
    %p103 = por %p101, %p102
    %p105 = scmp.ne.s32.totalorder %s90, %s104
    %p106 = scmp.eq.s32.totalorder %s17, 0
    %p107 = por %p105, %p106
    %s109 = sadd.s32 %s108, 1
    %p112 = scmp.eq.s32.totalorder %s11, 1
    %p113 = scmp.ne.s32.totalorder %s108, %s110
    %p114 = scmp.eq.s32.totalorder %s11, 0
    %p115 = por %p113, %p114
    %p116 = scmp.ne.s32.totalorder %s108, %s110
    %p117 = scmp.eq.s32.totalorder %s16, 1
    %p118 = por %p116, %p117
    %p119 = scmp.ne.s32.totalorder %s110, %s111
    %p120 = scmp.eq.s32.totalorder %s16, 0
    %p121 = por %p119, %p120
    %p122 = scmp.ne.s32.totalorder %s110, %s111
    %p123 = scmp.eq.s32.totalorder %s17, 1
    %p124 = por %p122, %p123
    %p126 = scmp.ne.s32.totalorder %s111, %s125
    %p127 = scmp.eq.s32.totalorder %s17, 0
    %p128 = por %p126, %p127
    %s130 = sadd.s32 %s129, 1
    %p133 = scmp.eq.s32.totalorder %s11, 1
    %p134 = scmp.ne.s32.totalorder %s129, %s131
    %p135 = scmp.eq.s32.totalorder %s11, 0
    %p136 = por %p134, %p135
    %p137 = scmp.ne.s32.totalorder %s129, %s131
    %p138 = scmp.eq.s32.totalorder %s16, 1
    %p139 = por %p137, %p138
    %p140 = scmp.ne.s32.totalorder %s131, %s132
    %p141 = scmp.eq.s32.totalorder %s16, 0
    %p142 = por %p140, %p141
    %p143 = scmp.ne.s32.totalorder %s131, %s132
    %p144 = scmp.eq.s32.totalorder %s17, 1
    %p145 = por %p143, %p144
    %p147 = scmp.ne.s32.totalorder %s132, %s146
    %p148 = scmp.eq.s32.totalorder %s17, 0
    %p149 = por %p147, %p148
    %p150 = scmp.le.s32.totalorder 1, %s11
    %p151 = scmp.lt.s32.totalorder %s11, 3
    %p152 = pnand %p150, %p151
    %p153 = pneg %p152
    // Predicated region
    $region9: #{cnn_block_forward.1} parent=5 // pred_check
      _
    $region10: #{cnn_block_forward.1} parent=5 // pred_check_branch
      %155 = sbr.rel (%p152) target = $region12
    $region11: #{cnn_block_forward.1} parent=5 // pred_region
      %s156 = ssub.s32 %s11, 1
      // Predicated region
      $region13: #{cnn_block_forward.1} parent=11 // pred_check
        %p157 = pneg %p58
      $region14: #{cnn_block_forward.1} parent=11 // pred_check_branch
        %159 = sbr.rel (%p157) target = $region16
      $region15: #{cnn_block_forward.1} parent=11 // pred_region
        _
      $region16: #{cnn_block_forward.1} parent=11 // pred_fallthru
        _
      // Predicated region
      $region17: #{cnn_block_forward.1} parent=11 // pred_check
        %p160 = pneg %p79
      $region18: #{cnn_block_forward.1} parent=11 // pred_check_branch
        %162 = sbr.rel (%p160) target = $region20
      $region19: #{cnn_block_forward.1} parent=11 // pred_region
        _
      $region20: #{cnn_block_forward.1} parent=11 // pred_fallthru
        _
      // Predicated region
      $region21: #{cnn_block_forward.1} parent=11 // pred_check
        %p163 = pneg %p100
      $region22: #{cnn_block_forward.1} parent=11 // pred_check_branch
        %165 = sbr.rel (%p163) target = $region24
      $region23: #{cnn_block_forward.1} parent=11 // pred_region
        _
      $region24: #{cnn_block_forward.1} parent=11 // pred_fallthru
        _
      // Predicated region
      $region25: #{cnn_block_forward.1} parent=11 // pred_check
        %p166 = pneg %p121
      $region26: #{cnn_block_forward.1} parent=11 // pred_check_branch
        %168 = sbr.rel (%p166) target = $region28
      $region27: #{cnn_block_forward.1} parent=11 // pred_region
        _
      $region28: #{cnn_block_forward.1} parent=11 // pred_fallthru
        _
    $region12: #{cnn_block_forward.1} parent=5 // pred_fallthru
      _
    %p169 = scmp.lt.s32.totalorder %s11, 2
    // Predicated region
    $region29: #{cnn_block_forward.1} parent=5 // pred_check
      %p170 = pneg %p169
    $region30: #{cnn_block_forward.1} parent=5 // pred_check_branch
      %172 = sbr.rel (%p170) target = $region32
    $region31: #{cnn_block_forward.1} parent=5 // pred_region
      // Predicated region
      $region33: #{cnn_block_forward.1} parent=31 // pred_check
        %p173 = pneg %p31
      $region34: #{cnn_block_forward.1} parent=31 // pred_check_branch
        %175 = sbr.rel (%p173) target = $region36
      $region35: #{cnn_block_forward.1} parent=31 // pred_region
        %p176 = scmp.lt.s32.totalorder %s11, 1
        %s177 = scalar_select %p176, %s11, 1
        %s178 = smul.addr %s177, 32
        %s179 = smul.addr %s178, 8
        %s180 = scalar_lea.vmem %s0, %s179
      $region36: #{cnn_block_forward.1} parent=31 // pred_fallthru
        _
    $region32: #{cnn_block_forward.1} parent=5 // pred_fallthru
      _
    %p181 = scmp.le.s32.totalorder 1, %s11
    %p182 = scmp.lt.s32.totalorder %s11, 3
    %p183 = pnand %p181, %p182
    %p184 = pneg %p183
    // Predicated region
    $region37: #{cnn_block_forward.1} parent=5 // pred_check
      _
    $region38: #{cnn_block_forward.1} parent=5 // pred_check_branch
      %186 = sbr.rel (%p183) target = $region40
    $region39: #{cnn_block_forward.1} parent=5 // pred_region
      %s187 = ssub.s32 %s11, 1
      %p188 = scmp.lt.s32.totalorder %s16, 1
      %s189 = scalar_select %p188, %s16, 1
      %s190 = smul.addr %s189, 32
      %s191 = smul.addr %s190, 8
      %s192 = scalar_lea.vmem %s0, %s191
      %p193 = pneg %p37
      %p194 = pneg %p34
      %p195 = pneg %p58
      %p196 = pneg %p55
      %p197 = pneg %p79
      %p198 = pneg %p76
      %p199 = pneg %p100
      %p200 = pneg %p97
      %p201 = pneg %p121
      %p202 = pneg %p118
      %p203 = pneg %p142
      %p204 = pneg %p139
      %p205 = scmp.lt.s32.totalorder %s16, 1
      %s206 = scalar_select %p205, %s16, 1
      %s207 = smul.addr %s206, 32
      %s208 = smul.addr %s207, 8
      %s209 = scalar_lea.vmem %s0, %s208
      %p211 = scmp.eq.s32.totalorder %s16, 0
      // Predicated region
      $region41: #{cnn_block_forward.1} parent=39 // pred_check
        %p212 = pneg %p211
      $region42: #{cnn_block_forward.1} parent=39 // pred_check_branch
        %214 = sbr.rel (%p212) target = $region44
      $region43: #{cnn_block_forward.1} parent=39 // pred_region
        %vm215 = vcmask 64512
        %216 = vst.msk [vmem:[#allocation2] sm:$0xff] %vm215, 0.0
        %217 = vst.msk [vmem:[#allocation2 + $0x8] sm:$0xff] %vm215, 0.0
        %vm218 = vcmask 58368
        %219 = vst.msk [vmem:[#allocation2 + $0x10] sm:$0x3] %vm218, 0.0
        %220 = vst.msk [vmem:[#allocation2 + $0x18] sm:$0xff] %vm215, 0.0
        %221 = vst.msk [vmem:[#allocation2 + $0x20] sm:$0xff] %vm215, 0.0
        %222 = vst.msk [vmem:[#allocation2 + $0x28] sm:$0x3] %vm218, 0.0
        %223 = vst.msk [vmem:[#allocation2 + $0x30] sm:$0xff] %vm215, 0.0
        %224 = vst.msk [vmem:[#allocation2 + $0x38] sm:$0xff] %vm215, 0.0
        %225 = vst.msk [vmem:[#allocation2 + $0x40] sm:$0x3] %vm218, 0.0
        %226 = vst.msk [vmem:[#allocation2 + $0x48] sm:$0xff] %vm215, 0.0
        %227 = vst.msk [vmem:[#allocation2 + $0x50] sm:$0xff] %vm215, 0.0
        %228 = vst.msk [vmem:[#allocation2 + $0x58] sm:$0x3] %vm218, 0.0
        %229 = vst.msk [vmem:[#allocation2 + $0x60] sm:$0xff] %vm215, 0.0
        %230 = vst.msk [vmem:[#allocation2 + $0x68] sm:$0xff] %vm215, 0.0
        %231 = vst.msk [vmem:[#allocation2 + $0x70] sm:$0x3] %vm218, 0.0
        %232 = vst.msk [vmem:[#allocation2 + $0x78] sm:$0xff] %vm215, 0.0
        %233 = vst.msk [vmem:[#allocation2 + $0x80] sm:$0xff] %vm215, 0.0
        %234 = vst.msk [vmem:[#allocation2 + $0x88] sm:$0x3] %vm218, 0.0
        %235 = vst.msk [vmem:[#allocation2 + $0x90] sm:$0xff] %vm215, 0.0
        %236 = vst.msk [vmem:[#allocation2 + $0x98] sm:$0xff] %vm215, 0.0
        %237 = vst.msk [vmem:[#allocation2 + $0xa0] sm:$0x3] %vm218, 0.0
        %238 = vst.msk [vmem:[#allocation2 + $0xa8] sm:$0xff] %vm215, 0.0
        %239 = vst.msk [vmem:[#allocation2 + $0xb0] sm:$0xff] %vm215, 0.0
        %240 = vst.msk [vmem:[#allocation2 + $0xb8] sm:$0x3] %vm218, 0.0
        %241 = vst.msk [vmem:[#allocation2 + $0xc0] sm:$0xff] %vm215, 0.0
        %242 = vst.msk [vmem:[#allocation2 + $0xc8] sm:$0xff] %vm215, 0.0
        %243 = vst.msk [vmem:[#allocation2 + $0xd0] sm:$0x3] %vm218, 0.0
        %244 = vst.msk [vmem:[#allocation2 + $0xd8] sm:$0xff] %vm215, 0.0
        %245 = vst.msk [vmem:[#allocation2 + $0xe0] sm:$0xff] %vm215, 0.0
        %246 = vst.msk [vmem:[#allocation2 + $0xe8] sm:$0x3] %vm218, 0.0
        %247 = vst.msk [vmem:[#allocation2 + $0xf0] sm:$0xff] %vm215, 0.0
        %248 = vst.msk [vmem:[#allocation2 + $0xf8] sm:$0xff] %vm215, 0.0
        %249 = vst.msk [vmem:[#allocation2 + $0x100] sm:$0x3] %vm218, 0.0
        %250 = vst.msk [vmem:[#allocation2 + $0x108] sm:$0xff] %vm215, 0.0
        %251 = vst.msk [vmem:[#allocation2 + $0x110] sm:$0xff] %vm215, 0.0
        %252 = vst.msk [vmem:[#allocation2 + $0x118] sm:$0x3] %vm218, 0.0
        %253 = vst.msk [vmem:[#allocation2 + $0x120] sm:$0xff] %vm215, 0.0
        %254 = vst.msk [vmem:[#allocation2 + $0x128] sm:$0xff] %vm215, 0.0
        %255 = vst.msk [vmem:[#allocation2 + $0x130] sm:$0x3] %vm218, 0.0
        %256 = vst.msk [vmem:[#allocation2 + $0x138] sm:$0xff] %vm215, 0.0
        %257 = vst.msk [vmem:[#allocation2 + $0x140] sm:$0xff] %vm215, 0.0
        %258 = vst.msk [vmem:[#allocation2 + $0x148] sm:$0x3] %vm218, 0.0
        %259 = vst.msk [vmem:[#allocation2 + $0x150] sm:$0xff] %vm215, 0.0
        %260 = vst.msk [vmem:[#allocation2 + $0x158] sm:$0xff] %vm215, 0.0
        %261 = vst.msk [vmem:[#allocation2 + $0x160] sm:$0x3] %vm218, 0.0
        %262 = vst.msk [vmem:[#allocation2 + $0x168] sm:$0xff] %vm215, 0.0
        %263 = vst.msk [vmem:[#allocation2 + $0x170] sm:$0xff] %vm215, 0.0
        %264 = vst.msk [vmem:[#allocation2 + $0x178] sm:$0x3] %vm218, 0.0
        %265 = vst.msk [vmem:[#allocation2 + $0x180] sm:$0xff] %vm215, 0.0
        %266 = vst.msk [vmem:[#allocation2 + $0x188] sm:$0xff] %vm215, 0.0
        %267 = vst.msk [vmem:[#allocation2 + $0x190] sm:$0x3] %vm218, 0.0
        %268 = vst.msk [vmem:[#allocation2 + $0x198] sm:$0xff] %vm215, 0.0
        %269 = vst.msk [vmem:[#allocation2 + $0x1a0] sm:$0xff] %vm215, 0.0
        %270 = vst.msk [vmem:[#allocation2 + $0x1a8] sm:$0x3] %vm218, 0.0
        %271 = vst [vmem:[#allocation3] sm:$0xff] 0.0
        %272 = vst [vmem:[#allocation3 + $0x8] sm:$0xff] 0.0
        %273 = vst [vmem:[#allocation3 + $0x10] sm:$0xff] 0.0
        %274 = vst [vmem:[#allocation3 + $0x18] sm:$0xff] 0.0
        %275 = vst [vmem:[#allocation3 + $0x20] sm:$0xff] 0.0
        %276 = vst [vmem:[#allocation3 + $0x28] sm:$0xff] 0.0
        %277 = vst [vmem:[#allocation3 + $0x30] sm:$0xff] 0.0
        %278 = vst [vmem:[#allocation3 + $0x38] sm:$0xff] 0.0
        %279 = vst [vmem:[#allocation3 + $0x40] sm:$0xff] 0.0
        %280 = vst [vmem:[#allocation3 + $0x48] sm:$0xff] 0.0
        %281 = vst [vmem:[#allocation3 + $0x50] sm:$0xff] 0.0
        %282 = vst [vmem:[#allocation3 + $0x58] sm:$0xff] 0.0
        %283 = vst [vmem:[#allocation3 + $0x60] sm:$0xff] 0.0
        %284 = vst [vmem:[#allocation3 + $0x68] sm:$0xff] 0.0
        %285 = vst [vmem:[#allocation3 + $0x70] sm:$0xff] 0.0
        %286 = vst [vmem:[#allocation3 + $0x78] sm:$0xff] 0.0
        %287 = vst [vmem:[#allocation3 + $0x80] sm:$0xff] 0.0
        %288 = vst [vmem:[#allocation3 + $0x88] sm:$0xff] 0.0
        %289 = vst [vmem:[#allocation3 + $0x90] sm:$0xff] 0.0
        %290 = vst [vmem:[#allocation3 + $0x98] sm:$0xff] 0.0
        %291 = vst [vmem:[#allocation3 + $0xa0] sm:$0xff] 0.0
        %292 = vst [vmem:[#allocation3 + $0xa8] sm:$0xff] 0.0
        %293 = vst [vmem:[#allocation3 + $0xb0] sm:$0xff] 0.0
        %294 = vst [vmem:[#allocation3 + $0xb8] sm:$0xff] 0.0
        %295 = vst [vmem:[#allocation3 + $0xc0] sm:$0xff] 0.0
        %296 = vst [vmem:[#allocation3 + $0xc8] sm:$0xff] 0.0
        %297 = vst [vmem:[#allocation3 + $0xd0] sm:$0xff] 0.0
        %298 = vst [vmem:[#allocation3 + $0xd8] sm:$0xff] 0.0
        %299 = vst [vmem:[#allocation3 + $0xe0] sm:$0xff] 0.0
        %300 = vst [vmem:[#allocation3 + $0xe8] sm:$0xff] 0.0
        %301 = vst [vmem:[#allocation3 + $0xf0] sm:$0xff] 0.0
        %302 = vst [vmem:[#allocation3 + $0xf8] sm:$0xff] 0.0
        %303 = vst [vmem:[#allocation4] sm:$0x1] 0.0
        %304 = vst [vmem:[#allocation5] sm:$0x1] 0.0
      $region44: #{cnn_block_forward.1} parent=39 // pred_fallthru
        _
      %v305 = vld [vmem:[%s209] sm:$0xff]
      %v306 = vld [vmem:[%s209 + $0x8] sm:$0xff]
      %v307 = vld [vmem:[%s209 + $0x10] sm:$0xff]
      %v308 = vld [vmem:[%s209 + $0x18] sm:$0xff]
      %v309 = vld [vmem:[%s209 + $0x20] sm:$0xff]
      %v310 = vld [vmem:[%s209 + $0x28] sm:$0xff]
      %v311 = vld [vmem:[%s209 + $0x30] sm:$0xff]
      %v312 = vld [vmem:[%s209 + $0x38] sm:$0xff]
      %v313 = vld [vmem:[%s209 + $0x40] sm:$0xff]
      %v314 = vld [vmem:[%s209 + $0x48] sm:$0xff]
      %v315 = vld [vmem:[%s209 + $0x50] sm:$0xff]
      %v316 = vld [vmem:[%s209 + $0x58] sm:$0xff]
      %v317 = vld [vmem:[%s209 + $0x60] sm:$0xff]
      %v318 = vld [vmem:[%s209 + $0x68] sm:$0xff]
      %v319 = vld [vmem:[%s209 + $0x70] sm:$0xff]
      %v320 = vld [vmem:[%s209 + $0x78] sm:$0xff]
      %v321 = vld [vmem:[%s209 + $0x80] sm:$0xff]
      %v322 = vld [vmem:[%s209 + $0x88] sm:$0xff]
      %v323 = vld [vmem:[%s209 + $0x90] sm:$0xff]
      %v324 = vld [vmem:[%s209 + $0x98] sm:$0xff]
      %v325 = vld [vmem:[%s209 + $0xa0] sm:$0xff]
      %v326 = vld [vmem:[%s209 + $0xa8] sm:$0xff]
      %v327 = vld [vmem:[%s209 + $0xb0] sm:$0xff]
      %v328 = vld [vmem:[%s209 + $0xb8] sm:$0xff]
      %v329 = vld [vmem:[%s209 + $0xc0] sm:$0xff]
      %v330 = vld [vmem:[%s209 + $0xc8] sm:$0xff]
      %v331 = vld [vmem:[%s209 + $0xd0] sm:$0xff]
      %v332 = vld [vmem:[%s209 + $0xd8] sm:$0xff]
      %v333 = vld [vmem:[%s209 + $0xe0] sm:$0xff]
      %v334 = vld [vmem:[%s209 + $0xe8] sm:$0xff]
      %v335 = vld [vmem:[%s209 + $0xf0] sm:$0xff]
      %v336 = vld [vmem:[%s209 + $0xf8] sm:$0xff]
      %s337 = scalar_lea.vmem [#allocation2], 24
      %vm338 = vcmask 64512
      %339 = vst.msk [vmem:[%s337 + $0x1] sm:$0xff] %vm338, %v305
      %340 = vst.msk [vmem:[%s337 + $0x9] sm:$0xff] %vm338, %v306
      %341 = vst.msk [vmem:[%s337 + $0x19] sm:$0xff] %vm338, %v307
      %342 = vst.msk [vmem:[%s337 + $0x21] sm:$0xff] %vm338, %v308
      %343 = vst.msk [vmem:[%s337 + $0x31] sm:$0xff] %vm338, %v309
      %344 = vst.msk [vmem:[%s337 + $0x39] sm:$0xff] %vm338, %v310
      %345 = vst.msk [vmem:[%s337 + $0x49] sm:$0xff] %vm338, %v311
      %346 = vst.msk [vmem:[%s337 + $0x51] sm:$0xff] %vm338, %v312
      %347 = vst.msk [vmem:[%s337 + $0x61] sm:$0xff] %vm338, %v313
      %348 = vst.msk [vmem:[%s337 + $0x69] sm:$0xff] %vm338, %v314
      %349 = vst.msk [vmem:[%s337 + $0x79] sm:$0xff] %vm338, %v315
      %350 = vst.msk [vmem:[%s337 + $0x81] sm:$0xff] %vm338, %v316
      %351 = vst.msk [vmem:[%s337 + $0x91] sm:$0xff] %vm338, %v317
      %352 = vst.msk [vmem:[%s337 + $0x99] sm:$0xff] %vm338, %v318
      %353 = vst.msk [vmem:[%s337 + $0xa9] sm:$0xff] %vm338, %v319
      %354 = vst.msk [vmem:[%s337 + $0xb1] sm:$0xff] %vm338, %v320
      %355 = vst.msk [vmem:[%s337 + $0xc1] sm:$0xff] %vm338, %v321
      %356 = vst.msk [vmem:[%s337 + $0xc9] sm:$0xff] %vm338, %v322
      %357 = vst.msk [vmem:[%s337 + $0xd9] sm:$0xff] %vm338, %v323
      %358 = vst.msk [vmem:[%s337 + $0xe1] sm:$0xff] %vm338, %v324
      %359 = vst.msk [vmem:[%s337 + $0xf1] sm:$0xff] %vm338, %v325
      %360 = vst.msk [vmem:[%s337 + $0xf9] sm:$0xff] %vm338, %v326
      %361 = vst.msk [vmem:[%s337 + $0x109] sm:$0xff] %vm338, %v327
      %362 = vst.msk [vmem:[%s337 + $0x111] sm:$0xff] %vm338, %v328
      %363 = vst.msk [vmem:[%s337 + $0x121] sm:$0xff] %vm338, %v329
      %364 = vst.msk [vmem:[%s337 + $0x129] sm:$0xff] %vm338, %v330
      %365 = vst.msk [vmem:[%s337 + $0x139] sm:$0xff] %vm338, %v331
      %366 = vst.msk [vmem:[%s337 + $0x141] sm:$0xff] %vm338, %v332
      %367 = vst.msk [vmem:[%s337 + $0x151] sm:$0xff] %vm338, %v333
      %368 = vst.msk [vmem:[%s337 + $0x159] sm:$0xff] %vm338, %v334
      %369 = vst.msk [vmem:[%s337 + $0x169] sm:$0xff] %vm338, %v335
      %370 = vst.msk [vmem:[%s337 + $0x171] sm:$0xff] %vm338, %v336
      %v371 = vld [vmem:[#allocation2] sm:$0xff]
      %v372 = vld [vmem:[#allocation2 + $0x8] sm:$0xff]
      %v373 = vld [vmem:[#allocation2 + $0x18] sm:$0xff]
      %v374 = vld [vmem:[#allocation2 + $0x20] sm:$0xff]
      %v375 = vld [vmem:[#allocation2 + $0x30] sm:$0xff]
      %v376 = vld [vmem:[#allocation2 + $0x38] sm:$0xff]
      %v377 = vld [vmem:[#allocation2 + $0x48] sm:$0xff]
      %v378 = vld [vmem:[#allocation2 + $0x50] sm:$0xff]
      %v379 = vld [vmem:[#allocation2 + $0x60] sm:$0xff]
      %v380 = vld [vmem:[#allocation2 + $0x68] sm:$0xff]
      %v381 = vld [vmem:[#allocation2 + $0x78] sm:$0xff]
      %v382 = vld [vmem:[#allocation2 + $0x80] sm:$0xff]
      %v383 = vld [vmem:[#allocation2 + $0x90] sm:$0xff]
      %v384 = vld [vmem:[#allocation2 + $0x98] sm:$0xff]
      %v385 = vld [vmem:[#allocation2 + $0xa8] sm:$0xff]
      %v386 = vld [vmem:[#allocation2 + $0xb0] sm:$0xff]
      %v387 = vld [vmem:[#allocation2 + $0xc0] sm:$0xff]
      %v388 = vld [vmem:[#allocation2 + $0xc8] sm:$0xff]
      %v389 = vld [vmem:[#allocation2 + $0xd8] sm:$0xff]
      %v390 = vld [vmem:[#allocation2 + $0xe0] sm:$0xff]
      %v391 = vld [vmem:[#allocation2 + $0xf0] sm:$0xff]
      %v392 = vld [vmem:[#allocation2 + $0xf8] sm:$0xff]
      %v393 = vld [vmem:[#allocation2 + $0x108] sm:$0xff]
      %v394 = vld [vmem:[#allocation2 + $0x110] sm:$0xff]
      %v395 = vld [vmem:[#allocation2 + $0x120] sm:$0xff]
      %v396 = vld [vmem:[#allocation2 + $0x128] sm:$0xff]
      %v397 = vld [vmem:[#allocation2 + $0x138] sm:$0xff]
      %v398 = vld [vmem:[#allocation2 + $0x140] sm:$0xff]
      %v399 = vld [vmem:[#allocation2 + $0x150] sm:$0xff]
      %v400 = vld [vmem:[#allocation2 + $0x158] sm:$0xff]
      %v401 = vld [vmem:[#allocation2 + $0x168] sm:$0xff]
      %v402 = vld [vmem:[#allocation2 + $0x170] sm:$0xff]
      %403 = vst.msk [vmem:[#allocation3] sm:$0xff] %vm338, %v371
      %404 = vst.msk [vmem:[#allocation3 + $0x8] sm:$0xff] %vm338, %v372
      %405 = vst.msk [vmem:[#allocation3 + $0x10] sm:$0xff] %vm338, %v373
      %406 = vst.msk [vmem:[#allocation3 + $0x18] sm:$0xff] %vm338, %v374
      %407 = vst.msk [vmem:[#allocation3 + $0x20] sm:$0xff] %vm338, %v375
      %408 = vst.msk [vmem:[#allocation3 + $0x28] sm:$0xff] %vm338, %v376
      %409 = vst.msk [vmem:[#allocation3 + $0x30] sm:$0xff] %vm338, %v377
      %410 = vst.msk [vmem:[#allocation3 + $0x38] sm:$0xff] %vm338, %v378
      %411 = vst.msk [vmem:[#allocation3 + $0x40] sm:$0xff] %vm338, %v379
      %412 = vst.msk [vmem:[#allocation3 + $0x48] sm:$0xff] %vm338, %v380
      %413 = vst.msk [vmem:[#allocation3 + $0x50] sm:$0xff] %vm338, %v381
      %414 = vst.msk [vmem:[#allocation3 + $0x58] sm:$0xff] %vm338, %v382
      %415 = vst.msk [vmem:[#allocation3 + $0x60] sm:$0xff] %vm338, %v383
      %416 = vst.msk [vmem:[#allocation3 + $0x68] sm:$0xff] %vm338, %v384
      %417 = vst.msk [vmem:[#allocation3 + $0x70] sm:$0xff] %vm338, %v385
      %418 = vst.msk [vmem:[#allocation3 + $0x78] sm:$0xff] %vm338, %v386
      %419 = vst.msk [vmem:[#allocation3 + $0x80] sm:$0xff] %vm338, %v387
      %420 = vst.msk [vmem:[#allocation3 + $0x88] sm:$0xff] %vm338, %v388
      %421 = vst.msk [vmem:[#allocation3 + $0x90] sm:$0xff] %vm338, %v389
      %422 = vst.msk [vmem:[#allocation3 + $0x98] sm:$0xff] %vm338, %v390
      %423 = vst.msk [vmem:[#allocation3 + $0xa0] sm:$0xff] %vm338, %v391
      %424 = vst.msk [vmem:[#allocation3 + $0xa8] sm:$0xff] %vm338, %v392
      %425 = vst.msk [vmem:[#allocation3 + $0xb0] sm:$0xff] %vm338, %v393
      %426 = vst.msk [vmem:[#allocation3 + $0xb8] sm:$0xff] %vm338, %v394
      %427 = vst.msk [vmem:[#allocation3 + $0xc0] sm:$0xff] %vm338, %v395
      %428 = vst.msk [vmem:[#allocation3 + $0xc8] sm:$0xff] %vm338, %v396
      %429 = vst.msk [vmem:[#allocation3 + $0xd0] sm:$0xff] %vm338, %v397
      %430 = vst.msk [vmem:[#allocation3 + $0xd8] sm:$0xff] %vm338, %v398
      %431 = vst.msk [vmem:[#allocation3 + $0xe0] sm:$0xff] %vm338, %v399
      %432 = vst.msk [vmem:[#allocation3 + $0xe8] sm:$0xff] %vm338, %v400
      %433 = vst.msk [vmem:[#allocation3 + $0xf0] sm:$0xff] %vm338, %v401
      %434 = vst.msk [vmem:[#allocation3 + $0xf8] sm:$0xff] %vm338, %v402
      %v435 = vld [vmem:[#allocation2 + $0x1] sm:$0xff]
      %v436 = vld [vmem:[#allocation2 + $0x9] sm:$0xff]
      %v437 = vld [vmem:[#allocation2 + $0x19] sm:$0xff]
      %v438 = vld [vmem:[#allocation2 + $0x21] sm:$0xff]
      %v439 = vld [vmem:[#allocation2 + $0x31] sm:$0xff]
      %v440 = vld [vmem:[#allocation2 + $0x39] sm:$0xff]
      %v441 = vld [vmem:[#allocation2 + $0x49] sm:$0xff]
      %v442 = vld [vmem:[#allocation2 + $0x51] sm:$0xff]
      %v443 = vld [vmem:[#allocation2 + $0x61] sm:$0xff]
      %v444 = vld [vmem:[#allocation2 + $0x69] sm:$0xff]
      %v445 = vld [vmem:[#allocation2 + $0x79] sm:$0xff]
      %v446 = vld [vmem:[#allocation2 + $0x81] sm:$0xff]
      %v447 = vld [vmem:[#allocation2 + $0x91] sm:$0xff]
      %v448 = vld [vmem:[#allocation2 + $0x99] sm:$0xff]
      %v449 = vld [vmem:[#allocation2 + $0xa9] sm:$0xff]
      %v450 = vld [vmem:[#allocation2 + $0xb1] sm:$0xff]
      %v451 = vld [vmem:[#allocation2 + $0xc1] sm:$0xff]
      %v452 = vld [vmem:[#allocation2 + $0xc9] sm:$0xff]
      %v453 = vld [vmem:[#allocation2 + $0xd9] sm:$0xff]
      %v454 = vld [vmem:[#allocation2 + $0xe1] sm:$0xff]
      %v455 = vld [vmem:[#allocation2 + $0xf1] sm:$0xff]
      %v456 = vld [vmem:[#allocation2 + $0xf9] sm:$0xff]
      %v457 = vld [vmem:[#allocation2 + $0x109] sm:$0xff]
      %v458 = vld [vmem:[#allocation2 + $0x111] sm:$0xff]
      %v459 = vld [vmem:[#allocation2 + $0x121] sm:$0xff]
      %v460 = vld [vmem:[#allocation2 + $0x129] sm:$0xff]
      %v461 = vld [vmem:[#allocation2 + $0x139] sm:$0xff]
      %v462 = vld [vmem:[#allocation2 + $0x141] sm:$0xff]
      %v463 = vld [vmem:[#allocation2 + $0x151] sm:$0xff]
      %v464 = vld [vmem:[#allocation2 + $0x159] sm:$0xff]
      %v465 = vld [vmem:[#allocation2 + $0x169] sm:$0xff]
      %v466 = vld [vmem:[#allocation2 + $0x171] sm:$0xff]
      %499 = vrot.lane.b32.xlu0 %v435, 8
      %v500 = vpop.permute.xlu0 %499
      %501 = vrot.lane.b32.xlu0 %v436, 8
      %v502 = vpop.permute.xlu0 %501
      %503 = vrot.lane.b32.xlu0 %v437, 8
      %v504 = vpop.permute.xlu0 %503
      %505 = vrot.lane.b32.xlu0 %v438, 8
      %v506 = vpop.permute.xlu0 %505
      %507 = vrot.lane.b32.xlu0 %v439, 8
      %v508 = vpop.permute.xlu0 %507
      %509 = vrot.lane.b32.xlu0 %v440, 8
      %v510 = vpop.permute.xlu0 %509
      %511 = vrot.lane.b32.xlu0 %v441, 8
      %v512 = vpop.permute.xlu0 %511
      %513 = vrot.lane.b32.xlu0 %v442, 8
      %v514 = vpop.permute.xlu0 %513
      %515 = vrot.lane.b32.xlu0 %v443, 8
      %v516 = vpop.permute.xlu0 %515
      %517 = vrot.lane.b32.xlu0 %v444, 8
      %v518 = vpop.permute.xlu0 %517
      %519 = vrot.lane.b32.xlu0 %v445, 8
      %v520 = vpop.permute.xlu0 %519
      %521 = vrot.lane.b32.xlu0 %v446, 8
      %v522 = vpop.permute.xlu0 %521
      %523 = vrot.lane.b32.xlu0 %v447, 8
      %v524 = vpop.permute.xlu0 %523
      %525 = vrot.lane.b32.xlu0 %v448, 8
      %v526 = vpop.permute.xlu0 %525
      %527 = vrot.lane.b32.xlu0 %v449, 8
      %v528 = vpop.permute.xlu0 %527
      %529 = vrot.lane.b32.xlu0 %v450, 8
      %v530 = vpop.permute.xlu0 %529
      %531 = vrot.lane.b32.xlu0 %v451, 8
      %v532 = vpop.permute.xlu0 %531
      %533 = vrot.lane.b32.xlu0 %v452, 8
      %v534 = vpop.permute.xlu0 %533
      %535 = vrot.lane.b32.xlu0 %v453, 8
      %v536 = vpop.permute.xlu0 %535
      %537 = vrot.lane.b32.xlu0 %v454, 8
      %v538 = vpop.permute.xlu0 %537
      %539 = vrot.lane.b32.xlu0 %v455, 8
      %v540 = vpop.permute.xlu0 %539
      %541 = vrot.lane.b32.xlu0 %v456, 8
      %v542 = vpop.permute.xlu0 %541
      %543 = vrot.lane.b32.xlu0 %v457, 8
      %v544 = vpop.permute.xlu0 %543
      %545 = vrot.lane.b32.xlu0 %v458, 8
      %v546 = vpop.permute.xlu0 %545
      %547 = vrot.lane.b32.xlu0 %v459, 8
      %v548 = vpop.permute.xlu0 %547
      %549 = vrot.lane.b32.xlu0 %v460, 8
      %v550 = vpop.permute.xlu0 %549
      %551 = vrot.lane.b32.xlu0 %v461, 8
      %v552 = vpop.permute.xlu0 %551
      %553 = vrot.lane.b32.xlu0 %v462, 8
      %v554 = vpop.permute.xlu0 %553
      %555 = vrot.lane.b32.xlu0 %v463, 8
      %v556 = vpop.permute.xlu0 %555
      %557 = vrot.lane.b32.xlu0 %v464, 8
      %v558 = vpop.permute.xlu0 %557
      %559 = vrot.lane.b32.xlu0 %v465, 8
      %v560 = vpop.permute.xlu0 %559
      %561 = vrot.lane.b32.xlu0 %v466, 8
      %v562 = vpop.permute.xlu0 %561
      %vm595 = vcmask 130112
      %596 = vst.msk [vmem:[#allocation3] sm:$0xff] %vm595, %v500
      %597 = vst.msk [vmem:[#allocation3 + $0x8] sm:$0xff] %vm595, %v502
      %598 = vst.msk [vmem:[#allocation3 + $0x10] sm:$0xff] %vm595, %v504
      %599 = vst.msk [vmem:[#allocation3 + $0x18] sm:$0xff] %vm595, %v506
      %600 = vst.msk [vmem:[#allocation3 + $0x20] sm:$0xff] %vm595, %v508
      %601 = vst.msk [vmem:[#allocation3 + $0x28] sm:$0xff] %vm595, %v510
      %602 = vst.msk [vmem:[#allocation3 + $0x30] sm:$0xff] %vm595, %v512
      %603 = vst.msk [vmem:[#allocation3 + $0x38] sm:$0xff] %vm595, %v514
      %604 = vst.msk [vmem:[#allocation3 + $0x40] sm:$0xff] %vm595, %v516
      %605 = vst.msk [vmem:[#allocation3 + $0x48] sm:$0xff] %vm595, %v518
      %606 = vst.msk [vmem:[#allocation3 + $0x50] sm:$0xff] %vm595, %v520
      %607 = vst.msk [vmem:[#allocation3 + $0x58] sm:$0xff] %vm595, %v522
      %608 = vst.msk [vmem:[#allocation3 + $0x60] sm:$0xff] %vm595, %v524
      %609 = vst.msk [vmem:[#allocation3 + $0x68] sm:$0xff] %vm595, %v526
      %610 = vst.msk [vmem:[#allocation3 + $0x70] sm:$0xff] %vm595, %v528
      %611 = vst.msk [vmem:[#allocation3 + $0x78] sm:$0xff] %vm595, %v530
      %612 = vst.msk [vmem:[#allocation3 + $0x80] sm:$0xff] %vm595, %v532
      %613 = vst.msk [vmem:[#allocation3 + $0x88] sm:$0xff] %vm595, %v534
      %614 = vst.msk [vmem:[#allocation3 + $0x90] sm:$0xff] %vm595, %v536
      %615 = vst.msk [vmem:[#allocation3 + $0x98] sm:$0xff] %vm595, %v538
      %616 = vst.msk [vmem:[#allocation3 + $0xa0] sm:$0xff] %vm595, %v540
      %617 = vst.msk [vmem:[#allocation3 + $0xa8] sm:$0xff] %vm595, %v542
      %618 = vst.msk [vmem:[#allocation3 + $0xb0] sm:$0xff] %vm595, %v544
      %619 = vst.msk [vmem:[#allocation3 + $0xb8] sm:$0xff] %vm595, %v546
      %620 = vst.msk [vmem:[#allocation3 + $0xc0] sm:$0xff] %vm595, %v548
      %621 = vst.msk [vmem:[#allocation3 + $0xc8] sm:$0xff] %vm595, %v550
      %622 = vst.msk [vmem:[#allocation3 + $0xd0] sm:$0xff] %vm595, %v552
      %623 = vst.msk [vmem:[#allocation3 + $0xd8] sm:$0xff] %vm595, %v554
      %624 = vst.msk [vmem:[#allocation3 + $0xe0] sm:$0xff] %vm595, %v556
      %625 = vst.msk [vmem:[#allocation3 + $0xe8] sm:$0xff] %vm595, %v558
      %626 = vst.msk [vmem:[#allocation3 + $0xf0] sm:$0xff] %vm595, %v560
      %627 = vst.msk [vmem:[#allocation3 + $0xf8] sm:$0xff] %vm595, %v562
      %v628 = vld [vmem:[#allocation2 + $0x2] sm:$0xff]
      %v629 = vld [vmem:[#allocation2 + $0xa] sm:$0xff]
      %v630 = vld [vmem:[#allocation2 + $0x1a] sm:$0xff]
      %v631 = vld [vmem:[#allocation2 + $0x22] sm:$0xff]
      %v632 = vld [vmem:[#allocation2 + $0x32] sm:$0xff]
      %v633 = vld [vmem:[#allocation2 + $0x3a] sm:$0xff]
      %v634 = vld [vmem:[#allocation2 + $0x4a] sm:$0xff]
      %v635 = vld [vmem:[#allocation2 + $0x52] sm:$0xff]
      %v636 = vld [vmem:[#allocation2 + $0x62] sm:$0xff]
      %v637 = vld [vmem:[#allocation2 + $0x6a] sm:$0xff]
      %v638 = vld [vmem:[#allocation2 + $0x7a] sm:$0xff]
      %v639 = vld [vmem:[#allocation2 + $0x82] sm:$0xff]
      %v640 = vld [vmem:[#allocation2 + $0x92] sm:$0xff]
      %v641 = vld [vmem:[#allocation2 + $0x9a] sm:$0xff]
      %v642 = vld [vmem:[#allocation2 + $0xaa] sm:$0xff]
      %v643 = vld [vmem:[#allocation2 + $0xb2] sm:$0xff]
      %v644 = vld [vmem:[#allocation2 + $0xc2] sm:$0xff]
      %v645 = vld [vmem:[#allocation2 + $0xca] sm:$0xff]
      %v646 = vld [vmem:[#allocation2 + $0xda] sm:$0xff]
      %v647 = vld [vmem:[#allocation2 + $0xe2] sm:$0xff]
      %v648 = vld [vmem:[#allocation2 + $0xf2] sm:$0xff]
      %v649 = vld [vmem:[#allocation2 + $0xfa] sm:$0xff]
      %v650 = vld [vmem:[#allocation2 + $0x10a] sm:$0xff]
      %v651 = vld [vmem:[#allocation2 + $0x112] sm:$0xff]
      %v652 = vld [vmem:[#allocation2 + $0x122] sm:$0xff]
      %v653 = vld [vmem:[#allocation2 + $0x12a] sm:$0xff]
      %v654 = vld [vmem:[#allocation2 + $0x13a] sm:$0xff]
      %v655 = vld [vmem:[#allocation2 + $0x142] sm:$0xff]
      %v656 = vld [vmem:[#allocation2 + $0x152] sm:$0xff]
      %v657 = vld [vmem:[#allocation2 + $0x15a] sm:$0xff]
      %v658 = vld [vmem:[#allocation2 + $0x16a] sm:$0xff]
      %v659 = vld [vmem:[#allocation2 + $0x172] sm:$0xff]
      %692 = vrot.lane.b32.xlu0 %v628, 16
      %v693 = vpop.permute.xlu0 %692
      %694 = vrot.lane.b32.xlu0 %v629, 16
      %v695 = vpop.permute.xlu0 %694
      %696 = vrot.lane.b32.xlu0 %v630, 16
      %v697 = vpop.permute.xlu0 %696
      %698 = vrot.lane.b32.xlu0 %v631, 16
      %v699 = vpop.permute.xlu0 %698
      %700 = vrot.lane.b32.xlu0 %v632, 16
      %v701 = vpop.permute.xlu0 %700
      %702 = vrot.lane.b32.xlu0 %v633, 16
      %v703 = vpop.permute.xlu0 %702
      %704 = vrot.lane.b32.xlu0 %v634, 16
      %v705 = vpop.permute.xlu0 %704
      %706 = vrot.lane.b32.xlu0 %v635, 16
      %v707 = vpop.permute.xlu0 %706
      %708 = vrot.lane.b32.xlu0 %v636, 16
      %v709 = vpop.permute.xlu0 %708
      %710 = vrot.lane.b32.xlu0 %v637, 16
      %v711 = vpop.permute.xlu0 %710
      %712 = vrot.lane.b32.xlu0 %v638, 16
      %v713 = vpop.permute.xlu0 %712
      %714 = vrot.lane.b32.xlu0 %v639, 16
      %v715 = vpop.permute.xlu0 %714
      %716 = vrot.lane.b32.xlu0 %v640, 16
      %v717 = vpop.permute.xlu0 %716
      %718 = vrot.lane.b32.xlu0 %v641, 16
      %v719 = vpop.permute.xlu0 %718
      %720 = vrot.lane.b32.xlu0 %v642, 16
      %v721 = vpop.permute.xlu0 %720
      %722 = vrot.lane.b32.xlu0 %v643, 16
      %v723 = vpop.permute.xlu0 %722
      %724 = vrot.lane.b32.xlu0 %v644, 16
      %v725 = vpop.permute.xlu0 %724
      %726 = vrot.lane.b32.xlu0 %v645, 16
      %v727 = vpop.permute.xlu0 %726
      %728 = vrot.lane.b32.xlu0 %v646, 16
      %v729 = vpop.permute.xlu0 %728
      %730 = vrot.lane.b32.xlu0 %v647, 16
      %v731 = vpop.permute.xlu0 %730
      %732 = vrot.lane.b32.xlu0 %v648, 16
      %v733 = vpop.permute.xlu0 %732
      %734 = vrot.lane.b32.xlu0 %v649, 16
      %v735 = vpop.permute.xlu0 %734
      %736 = vrot.lane.b32.xlu0 %v650, 16
      %v737 = vpop.permute.xlu0 %736
      %738 = vrot.lane.b32.xlu0 %v651, 16
      %v739 = vpop.permute.xlu0 %738
      %740 = vrot.lane.b32.xlu0 %v652, 16
      %v741 = vpop.permute.xlu0 %740
      %742 = vrot.lane.b32.xlu0 %v653, 16
      %v743 = vpop.permute.xlu0 %742
      %744 = vrot.lane.b32.xlu0 %v654, 16
      %v745 = vpop.permute.xlu0 %744
      %746 = vrot.lane.b32.xlu0 %v655, 16
      %v747 = vpop.permute.xlu0 %746
      %748 = vrot.lane.b32.xlu0 %v656, 16
      %v749 = vpop.permute.xlu0 %748
      %750 = vrot.lane.b32.xlu0 %v657, 16
      %v751 = vpop.permute.xlu0 %750
      %752 = vrot.lane.b32.xlu0 %v658, 16
      %v753 = vpop.permute.xlu0 %752
      %754 = vrot.lane.b32.xlu0 %v659, 16
      %v755 = vpop.permute.xlu0 %754
      %vm788 = vcmask 195712
      %789 = vst.msk [vmem:[#allocation3] sm:$0xff] %vm788, %v693
      %790 = vst.msk [vmem:[#allocation3 + $0x8] sm:$0xff] %vm788, %v695
      %791 = vst.msk [vmem:[#allocation3 + $0x10] sm:$0xff] %vm788, %v697
      %792 = vst.msk [vmem:[#allocation3 + $0x18] sm:$0xff] %vm788, %v699
      %793 = vst.msk [vmem:[#allocation3 + $0x20] sm:$0xff] %vm788, %v701
      %794 = vst.msk [vmem:[#allocation3 + $0x28] sm:$0xff] %vm788, %v703
      %795 = vst.msk [vmem:[#allocation3 + $0x30] sm:$0xff] %vm788, %v705
      %796 = vst.msk [vmem:[#allocation3 + $0x38] sm:$0xff] %vm788, %v707
      %797 = vst.msk [vmem:[#allocation3 + $0x40] sm:$0xff] %vm788, %v709
      %798 = vst.msk [vmem:[#allocation3 + $0x48] sm:$0xff] %vm788, %v711
      %799 = vst.msk [vmem:[#allocation3 + $0x50] sm:$0xff] %vm788, %v713
      %800 = vst.msk [vmem:[#allocation3 + $0x58] sm:$0xff] %vm788, %v715
      %801 = vst.msk [vmem:[#allocation3 + $0x60] sm:$0xff] %vm788, %v717
      %802 = vst.msk [vmem:[#allocation3 + $0x68] sm:$0xff] %vm788, %v719
      %803 = vst.msk [vmem:[#allocation3 + $0x70] sm:$0xff] %vm788, %v721
      %804 = vst.msk [vmem:[#allocation3 + $0x78] sm:$0xff] %vm788, %v723
      %805 = vst.msk [vmem:[#allocation3 + $0x80] sm:$0xff] %vm788, %v725
      %806 = vst.msk [vmem:[#allocation3 + $0x88] sm:$0xff] %vm788, %v727
      %807 = vst.msk [vmem:[#allocation3 + $0x90] sm:$0xff] %vm788, %v729
      %808 = vst.msk [vmem:[#allocation3 + $0x98] sm:$0xff] %vm788, %v731
      %809 = vst.msk [vmem:[#allocation3 + $0xa0] sm:$0xff] %vm788, %v733
      %810 = vst.msk [vmem:[#allocation3 + $0xa8] sm:$0xff] %vm788, %v735
      %811 = vst.msk [vmem:[#allocation3 + $0xb0] sm:$0xff] %vm788, %v737
      %812 = vst.msk [vmem:[#allocation3 + $0xb8] sm:$0xff] %vm788, %v739
      %813 = vst.msk [vmem:[#allocation3 + $0xc0] sm:$0xff] %vm788, %v741
      %814 = vst.msk [vmem:[#allocation3 + $0xc8] sm:$0xff] %vm788, %v743
      %815 = vst.msk [vmem:[#allocation3 + $0xd0] sm:$0xff] %vm788, %v745
      %816 = vst.msk [vmem:[#allocation3 + $0xd8] sm:$0xff] %vm788, %v747
      %817 = vst.msk [vmem:[#allocation3 + $0xe0] sm:$0xff] %vm788, %v749
      %818 = vst.msk [vmem:[#allocation3 + $0xe8] sm:$0xff] %vm788, %v751
      %819 = vst.msk [vmem:[#allocation3 + $0xf0] sm:$0xff] %vm788, %v753
      %820 = vst.msk [vmem:[#allocation3 + $0xf8] sm:$0xff] %vm788, %v755
      %v821 = vld [vmem:[%s337] sm:$0xff]
      %v822 = vld [vmem:[%s337 + $0x8] sm:$0xff]
      %v823 = vld [vmem:[%s337 + $0x18] sm:$0xff]
      %v824 = vld [vmem:[%s337 + $0x20] sm:$0xff]
      %v825 = vld [vmem:[%s337 + $0x30] sm:$0xff]
      %v826 = vld [vmem:[%s337 + $0x38] sm:$0xff]
      %v827 = vld [vmem:[%s337 + $0x48] sm:$0xff]
      %v828 = vld [vmem:[%s337 + $0x50] sm:$0xff]
      %v829 = vld [vmem:[%s337 + $0x60] sm:$0xff]
      %v830 = vld [vmem:[%s337 + $0x68] sm:$0xff]
      %v831 = vld [vmem:[%s337 + $0x78] sm:$0xff]
      %v832 = vld [vmem:[%s337 + $0x80] sm:$0xff]
      %v833 = vld [vmem:[%s337 + $0x90] sm:$0xff]
      %v834 = vld [vmem:[%s337 + $0x98] sm:$0xff]
      %v835 = vld [vmem:[%s337 + $0xa8] sm:$0xff]
      %v836 = vld [vmem:[%s337 + $0xb0] sm:$0xff]
      %v837 = vld [vmem:[%s337 + $0xc0] sm:$0xff]
      %v838 = vld [vmem:[%s337 + $0xc8] sm:$0xff]
      %v839 = vld [vmem:[%s337 + $0xd8] sm:$0xff]
      %v840 = vld [vmem:[%s337 + $0xe0] sm:$0xff]
      %v841 = vld [vmem:[%s337 + $0xf0] sm:$0xff]
      %v842 = vld [vmem:[%s337 + $0xf8] sm:$0xff]
      %v843 = vld [vmem:[%s337 + $0x108] sm:$0xff]
      %v844 = vld [vmem:[%s337 + $0x110] sm:$0xff]
      %v845 = vld [vmem:[%s337 + $0x120] sm:$0xff]
      %v846 = vld [vmem:[%s337 + $0x128] sm:$0xff]
      %v847 = vld [vmem:[%s337 + $0x138] sm:$0xff]
      %v848 = vld [vmem:[%s337 + $0x140] sm:$0xff]
      %v849 = vld [vmem:[%s337 + $0x150] sm:$0xff]
      %v850 = vld [vmem:[%s337 + $0x158] sm:$0xff]
      %v851 = vld [vmem:[%s337 + $0x168] sm:$0xff]
      %v852 = vld [vmem:[%s337 + $0x170] sm:$0xff]
      %885 = vrot.lane.b32.xlu0 %v821, 24
      %v886 = vpop.permute.xlu0 %885
      %887 = vrot.lane.b32.xlu0 %v822, 24
      %v888 = vpop.permute.xlu0 %887
      %889 = vrot.lane.b32.xlu0 %v823, 24
      %v890 = vpop.permute.xlu0 %889
      %891 = vrot.lane.b32.xlu0 %v824, 24
      %v892 = vpop.permute.xlu0 %891
      %893 = vrot.lane.b32.xlu0 %v825, 24
      %v894 = vpop.permute.xlu0 %893
      %895 = vrot.lane.b32.xlu0 %v826, 24
      %v896 = vpop.permute.xlu0 %895
      %897 = vrot.lane.b32.xlu0 %v827, 24
      %v898 = vpop.permute.xlu0 %897
      %899 = vrot.lane.b32.xlu0 %v828, 24
      %v900 = vpop.permute.xlu0 %899
      %901 = vrot.lane.b32.xlu0 %v829, 24
      %v902 = vpop.permute.xlu0 %901
      %903 = vrot.lane.b32.xlu0 %v830, 24
      %v904 = vpop.permute.xlu0 %903
      %905 = vrot.lane.b32.xlu0 %v831, 24
      %v906 = vpop.permute.xlu0 %905
      %907 = vrot.lane.b32.xlu0 %v832, 24
      %v908 = vpop.permute.xlu0 %907
      %909 = vrot.lane.b32.xlu0 %v833, 24
      %v910 = vpop.permute.xlu0 %909
      %911 = vrot.lane.b32.xlu0 %v834, 24
      %v912 = vpop.permute.xlu0 %911
      %913 = vrot.lane.b32.xlu0 %v835, 24
      %v914 = vpop.permute.xlu0 %913
      %915 = vrot.lane.b32.xlu0 %v836, 24
      %v916 = vpop.permute.xlu0 %915
      %917 = vrot.lane.b32.xlu0 %v837, 24
      %v918 = vpop.permute.xlu0 %917
      %919 = vrot.lane.b32.xlu0 %v838, 24
      %v920 = vpop.permute.xlu0 %919
      %921 = vrot.lane.b32.xlu0 %v839, 24
      %v922 = vpop.permute.xlu0 %921
      %923 = vrot.lane.b32.xlu0 %v840, 24
      %v924 = vpop.permute.xlu0 %923
      %925 = vrot.lane.b32.xlu0 %v841, 24
      %v926 = vpop.permute.xlu0 %925
      %927 = vrot.lane.b32.xlu0 %v842, 24
      %v928 = vpop.permute.xlu0 %927
      %929 = vrot.lane.b32.xlu0 %v843, 24
      %v930 = vpop.permute.xlu0 %929
      %931 = vrot.lane.b32.xlu0 %v844, 24
      %v932 = vpop.permute.xlu0 %931
      %933 = vrot.lane.b32.xlu0 %v845, 24
      %v934 = vpop.permute.xlu0 %933
      %935 = vrot.lane.b32.xlu0 %v846, 24
      %v936 = vpop.permute.xlu0 %935
      %937 = vrot.lane.b32.xlu0 %v847, 24
      %v938 = vpop.permute.xlu0 %937
      %939 = vrot.lane.b32.xlu0 %v848, 24
      %v940 = vpop.permute.xlu0 %939
      %941 = vrot.lane.b32.xlu0 %v849, 24
      %v942 = vpop.permute.xlu0 %941
      %943 = vrot.lane.b32.xlu0 %v850, 24
      %v944 = vpop.permute.xlu0 %943
      %945 = vrot.lane.b32.xlu0 %v851, 24
      %v946 = vpop.permute.xlu0 %945
      %947 = vrot.lane.b32.xlu0 %v852, 24
      %v948 = vpop.permute.xlu0 %947
      %vm981 = vcmask 261312
      %982 = vst.msk [vmem:[#allocation3] sm:$0xff] %vm981, %v886
      %983 = vst.msk [vmem:[#allocation3 + $0x8] sm:$0xff] %vm981, %v888
      %984 = vst.msk [vmem:[#allocation3 + $0x10] sm:$0xff] %vm981, %v890
      %985 = vst.msk [vmem:[#allocation3 + $0x18] sm:$0xff] %vm981, %v892
      %986 = vst.msk [vmem:[#allocation3 + $0x20] sm:$0xff] %vm981, %v894
      %987 = vst.msk [vmem:[#allocation3 + $0x28] sm:$0xff] %vm981, %v896
      %988 = vst.msk [vmem:[#allocation3 + $0x30] sm:$0xff] %vm981, %v898
      %989 = vst.msk [vmem:[#allocation3 + $0x38] sm:$0xff] %vm981, %v900
      %990 = vst.msk [vmem:[#allocation3 + $0x40] sm:$0xff] %vm981, %v902
      %991 = vst.msk [vmem:[#allocation3 + $0x48] sm:$0xff] %vm981, %v904
      %992 = vst.msk [vmem:[#allocation3 + $0x50] sm:$0xff] %vm981, %v906
      %993 = vst.msk [vmem:[#allocation3 + $0x58] sm:$0xff] %vm981, %v908
      %994 = vst.msk [vmem:[#allocation3 + $0x60] sm:$0xff] %vm981, %v910
      %995 = vst.msk [vmem:[#allocation3 + $0x68] sm:$0xff] %vm981, %v912
      %996 = vst.msk [vmem:[#allocation3 + $0x70] sm:$0xff] %vm981, %v914
      %997 = vst.msk [vmem:[#allocation3 + $0x78] sm:$0xff] %vm981, %v916
      %998 = vst.msk [vmem:[#allocation3 + $0x80] sm:$0xff] %vm981, %v918
      %999 = vst.msk [vmem:[#allocation3 + $0x88] sm:$0xff] %vm981, %v920
      %1000 = vst.msk [vmem:[#allocation3 + $0x90] sm:$0xff] %vm981, %v922
      %1001 = vst.msk [vmem:[#allocation3 + $0x98] sm:$0xff] %vm981, %v924
      %1002 = vst.msk [vmem:[#allocation3 + $0xa0] sm:$0xff] %vm981, %v926
      %1003 = vst.msk [vmem:[#allocation3 + $0xa8] sm:$0xff] %vm981, %v928
      %1004 = vst.msk [vmem:[#allocation3 + $0xb0] sm:$0xff] %vm981, %v930
      %1005 = vst.msk [vmem:[#allocation3 + $0xb8] sm:$0xff] %vm981, %v932
      %1006 = vst.msk [vmem:[#allocation3 + $0xc0] sm:$0xff] %vm981, %v934
      %1007 = vst.msk [vmem:[#allocation3 + $0xc8] sm:$0xff] %vm981, %v936
      %1008 = vst.msk [vmem:[#allocation3 + $0xd0] sm:$0xff] %vm981, %v938
      %1009 = vst.msk [vmem:[#allocation3 + $0xd8] sm:$0xff] %vm981, %v940
      %1010 = vst.msk [vmem:[#allocation3 + $0xe0] sm:$0xff] %vm981, %v942
      %1011 = vst.msk [vmem:[#allocation3 + $0xe8] sm:$0xff] %vm981, %v944
      %1012 = vst.msk [vmem:[#allocation3 + $0xf0] sm:$0xff] %vm981, %v946
      %1013 = vst.msk [vmem:[#allocation3 + $0xf8] sm:$0xff] %vm981, %v948
      %v1014 = vld [vmem:[%s337 + $0x1] sm:$0xff]
      %v1015 = vld [vmem:[%s337 + $0x9] sm:$0xff]
      %v1016 = vld [vmem:[%s337 + $0x19] sm:$0xff]
      %v1017 = vld [vmem:[%s337 + $0x21] sm:$0xff]
      %v1018 = vld [vmem:[%s337 + $0x31] sm:$0xff]
      %v1019 = vld [vmem:[%s337 + $0x39] sm:$0xff]
      %v1020 = vld [vmem:[%s337 + $0x49] sm:$0xff]
      %v1021 = vld [vmem:[%s337 + $0x51] sm:$0xff]
      %v1022 = vld [vmem:[%s337 + $0x61] sm:$0xff]
      %v1023 = vld [vmem:[%s337 + $0x69] sm:$0xff]
      %v1024 = vld [vmem:[%s337 + $0x79] sm:$0xff]
      %v1025 = vld [vmem:[%s337 + $0x81] sm:$0xff]
      %v1026 = vld [vmem:[%s337 + $0x91] sm:$0xff]
      %v1027 = vld [vmem:[%s337 + $0x99] sm:$0xff]
      %v1028 = vld [vmem:[%s337 + $0xa9] sm:$0xff]
      %v1029 = vld [vmem:[%s337 + $0xb1] sm:$0xff]
      %v1030 = vld [vmem:[%s337 + $0xc1] sm:$0xff]
      %v1031 = vld [vmem:[%s337 + $0xc9] sm:$0xff]
      %v1032 = vld [vmem:[%s337 + $0xd9] sm:$0xff]
      %v1033 = vld [vmem:[%s337 + $0xe1] sm:$0xff]
      %v1034 = vld [vmem:[%s337 + $0xf1] sm:$0xff]
      %v1035 = vld [vmem:[%s337 + $0xf9] sm:$0xff]
      %v1036 = vld [vmem:[%s337 + $0x109] sm:$0xff]
      %v1037 = vld [vmem:[%s337 + $0x111] sm:$0xff]
      %v1038 = vld [vmem:[%s337 + $0x121] sm:$0xff]
      %v1039 = vld [vmem:[%s337 + $0x129] sm:$0xff]
      %v1040 = vld [vmem:[%s337 + $0x139] sm:$0xff]
      %v1041 = vld [vmem:[%s337 + $0x141] sm:$0xff]
      %v1042 = vld [vmem:[%s337 + $0x151] sm:$0xff]
      %v1043 = vld [vmem:[%s337 + $0x159] sm:$0xff]
      %v1044 = vld [vmem:[%s337 + $0x169] sm:$0xff]
      %v1045 = vld [vmem:[%s337 + $0x171] sm:$0xff]
      %1078 = vrot.lane.b32.xlu0 %v1014, 32
      %v1079 = vpop.permute.xlu0 %1078
      %1080 = vrot.lane.b32.xlu0 %v1015, 32
      %v1081 = vpop.permute.xlu0 %1080
      %1082 = vrot.lane.b32.xlu0 %v1016, 32
      %v1083 = vpop.permute.xlu0 %1082
      %1084 = vrot.lane.b32.xlu0 %v1017, 32
      %v1085 = vpop.permute.xlu0 %1084
      %1086 = vrot.lane.b32.xlu0 %v1018, 32
      %v1087 = vpop.permute.xlu0 %1086
      %1088 = vrot.lane.b32.xlu0 %v1019, 32
      %v1089 = vpop.permute.xlu0 %1088
      %1090 = vrot.lane.b32.xlu0 %v1020, 32
      %v1091 = vpop.permute.xlu0 %1090
      %1092 = vrot.lane.b32.xlu0 %v1021, 32
      %v1093 = vpop.permute.xlu0 %1092
      %1094 = vrot.lane.b32.xlu0 %v1022, 32
      %v1095 = vpop.permute.xlu0 %1094
      %1096 = vrot.lane.b32.xlu0 %v1023, 32
      %v1097 = vpop.permute.xlu0 %1096
      %1098 = vrot.lane.b32.xlu0 %v1024, 32
      %v1099 = vpop.permute.xlu0 %1098
      %1100 = vrot.lane.b32.xlu0 %v1025, 32
      %v1101 = vpop.permute.xlu0 %1100
      %1102 = vrot.lane.b32.xlu0 %v1026, 32
      %v1103 = vpop.permute.xlu0 %1102
      %1104 = vrot.lane.b32.xlu0 %v1027, 32
      %v1105 = vpop.permute.xlu0 %1104
      %1106 = vrot.lane.b32.xlu0 %v1028, 32
      %v1107 = vpop.permute.xlu0 %1106
      %1108 = vrot.lane.b32.xlu0 %v1029, 32
      %v1109 = vpop.permute.xlu0 %1108
      %1110 = vrot.lane.b32.xlu0 %v1030, 32
      %v1111 = vpop.permute.xlu0 %1110
      %1112 = vrot.lane.b32.xlu0 %v1031, 32
      %v1113 = vpop.permute.xlu0 %1112
      %1114 = vrot.lane.b32.xlu0 %v1032, 32
      %v1115 = vpop.permute.xlu0 %1114
      %1116 = vrot.lane.b32.xlu0 %v1033, 32
      %v1117 = vpop.permute.xlu0 %1116
      %1118 = vrot.lane.b32.xlu0 %v1034, 32
      %v1119 = vpop.permute.xlu0 %1118
      %1120 = vrot.lane.b32.xlu0 %v1035, 32
      %v1121 = vpop.permute.xlu0 %1120
      %1122 = vrot.lane.b32.xlu0 %v1036, 32
      %v1123 = vpop.permute.xlu0 %1122
      %1124 = vrot.lane.b32.xlu0 %v1037, 32
      %v1125 = vpop.permute.xlu0 %1124
      %1126 = vrot.lane.b32.xlu0 %v1038, 32
      %v1127 = vpop.permute.xlu0 %1126
      %1128 = vrot.lane.b32.xlu0 %v1039, 32
      %v1129 = vpop.permute.xlu0 %1128
      %1130 = vrot.lane.b32.xlu0 %v1040, 32
      %v1131 = vpop.permute.xlu0 %1130
      %1132 = vrot.lane.b32.xlu0 %v1041, 32
      %v1133 = vpop.permute.xlu0 %1132
      %1134 = vrot.lane.b32.xlu0 %v1042, 32
      %v1135 = vpop.permute.xlu0 %1134
      %1136 = vrot.lane.b32.xlu0 %v1043, 32
      %v1137 = vpop.permute.xlu0 %1136
      %1138 = vrot.lane.b32.xlu0 %v1044, 32
      %v1139 = vpop.permute.xlu0 %1138
      %1140 = vrot.lane.b32.xlu0 %v1045, 32
      %v1141 = vpop.permute.xlu0 %1140
      %vm1174 = vcmask 326912
      %1175 = vst.msk [vmem:[#allocation3] sm:$0xff] %vm1174, %v1079
      %1176 = vst.msk [vmem:[#allocation3 + $0x8] sm:$0xff] %vm1174, %v1081
      %1177 = vst.msk [vmem:[#allocation3 + $0x10] sm:$0xff] %vm1174, %v1083
      %1178 = vst.msk [vmem:[#allocation3 + $0x18] sm:$0xff] %vm1174, %v1085
      %1179 = vst.msk [vmem:[#allocation3 + $0x20] sm:$0xff] %vm1174, %v1087
      %1180 = vst.msk [vmem:[#allocation3 + $0x28] sm:$0xff] %vm1174, %v1089
      %1181 = vst.msk [vmem:[#allocation3 + $0x30] sm:$0xff] %vm1174, %v1091
      %1182 = vst.msk [vmem:[#allocation3 + $0x38] sm:$0xff] %vm1174, %v1093
      %1183 = vst.msk [vmem:[#allocation3 + $0x40] sm:$0xff] %vm1174, %v1095
      %1184 = vst.msk [vmem:[#allocation3 + $0x48] sm:$0xff] %vm1174, %v1097
      %1185 = vst.msk [vmem:[#allocation3 + $0x50] sm:$0xff] %vm1174, %v1099
      %1186 = vst.msk [vmem:[#allocation3 + $0x58] sm:$0xff] %vm1174, %v1101
      %1187 = vst.msk [vmem:[#allocation3 + $0x60] sm:$0xff] %vm1174, %v1103
      %1188 = vst.msk [vmem:[#allocation3 + $0x68] sm:$0xff] %vm1174, %v1105
      %1189 = vst.msk [vmem:[#allocation3 + $0x70] sm:$0xff] %vm1174, %v1107
      %1190 = vst.msk [vmem:[#allocation3 + $0x78] sm:$0xff] %vm1174, %v1109
      %1191 = vst.msk [vmem:[#allocation3 + $0x80] sm:$0xff] %vm1174, %v1111
      %1192 = vst.msk [vmem:[#allocation3 + $0x88] sm:$0xff] %vm1174, %v1113
      %1193 = vst.msk [vmem:[#allocation3 + $0x90] sm:$0xff] %vm1174, %v1115
      %1194 = vst.msk [vmem:[#allocation3 + $0x98] sm:$0xff] %vm1174, %v1117
      %1195 = vst.msk [vmem:[#allocation3 + $0xa0] sm:$0xff] %vm1174, %v1119
      %1196 = vst.msk [vmem:[#allocation3 + $0xa8] sm:$0xff] %vm1174, %v1121
      %1197 = vst.msk [vmem:[#allocation3 + $0xb0] sm:$0xff] %vm1174, %v1123
      %1198 = vst.msk [vmem:[#allocation3 + $0xb8] sm:$0xff] %vm1174, %v1125
      %1199 = vst.msk [vmem:[#allocation3 + $0xc0] sm:$0xff] %vm1174, %v1127
      %1200 = vst.msk [vmem:[#allocation3 + $0xc8] sm:$0xff] %vm1174, %v1129
      %1201 = vst.msk [vmem:[#allocation3 + $0xd0] sm:$0xff] %vm1174, %v1131
      %1202 = vst.msk [vmem:[#allocation3 + $0xd8] sm:$0xff] %vm1174, %v1133
      %1203 = vst.msk [vmem:[#allocation3 + $0xe0] sm:$0xff] %vm1174, %v1135
      %1204 = vst.msk [vmem:[#allocation3 + $0xe8] sm:$0xff] %vm1174, %v1137
      %1205 = vst.msk [vmem:[#allocation3 + $0xf0] sm:$0xff] %vm1174, %v1139
      %1206 = vst.msk [vmem:[#allocation3 + $0xf8] sm:$0xff] %vm1174, %v1141
      %v1207 = vld [vmem:[%s337 + $0x2] sm:$0xff]
      %v1208 = vld [vmem:[%s337 + $0xa] sm:$0xff]
      %v1209 = vld [vmem:[%s337 + $0x1a] sm:$0xff]
      %v1210 = vld [vmem:[%s337 + $0x22] sm:$0xff]
      %v1211 = vld [vmem:[%s337 + $0x32] sm:$0xff]
      %v1212 = vld [vmem:[%s337 + $0x3a] sm:$0xff]
      %v1213 = vld [vmem:[%s337 + $0x4a] sm:$0xff]
      %v1214 = vld [vmem:[%s337 + $0x52] sm:$0xff]
      %v1215 = vld [vmem:[%s337 + $0x62] sm:$0xff]
      %v1216 = vld [vmem:[%s337 + $0x6a] sm:$0xff]
      %v1217 = vld [vmem:[%s337 + $0x7a] sm:$0xff]
      %v1218 = vld [vmem:[%s337 + $0x82] sm:$0xff]
      %v1219 = vld [vmem:[%s337 + $0x92] sm:$0xff]
      %v1220 = vld [vmem:[%s337 + $0x9a] sm:$0xff]
      %v1221 = vld [vmem:[%s337 + $0xaa] sm:$0xff]
      %v1222 = vld [vmem:[%s337 + $0xb2] sm:$0xff]
      %v1223 = vld [vmem:[%s337 + $0xc2] sm:$0xff]
      %v1224 = vld [vmem:[%s337 + $0xca] sm:$0xff]
      %v1225 = vld [vmem:[%s337 + $0xda] sm:$0xff]
      %v1226 = vld [vmem:[%s337 + $0xe2] sm:$0xff]
      %v1227 = vld [vmem:[%s337 + $0xf2] sm:$0xff]
      %v1228 = vld [vmem:[%s337 + $0xfa] sm:$0xff]
      %v1229 = vld [vmem:[%s337 + $0x10a] sm:$0xff]
      %v1230 = vld [vmem:[%s337 + $0x112] sm:$0xff]
      %v1231 = vld [vmem:[%s337 + $0x122] sm:$0xff]
      %v1232 = vld [vmem:[%s337 + $0x12a] sm:$0xff]
      %v1233 = vld [vmem:[%s337 + $0x13a] sm:$0xff]
      %v1234 = vld [vmem:[%s337 + $0x142] sm:$0xff]
      %v1235 = vld [vmem:[%s337 + $0x152] sm:$0xff]
      %v1236 = vld [vmem:[%s337 + $0x15a] sm:$0xff]
      %v1237 = vld [vmem:[%s337 + $0x16a] sm:$0xff]
      %v1238 = vld [vmem:[%s337 + $0x172] sm:$0xff]
      %1271 = vrot.lane.b32.xlu0 %v1207, 40
      %v1272 = vpop.permute.xlu0 %1271
      %1273 = vrot.lane.b32.xlu0 %v1208, 40
      %v1274 = vpop.permute.xlu0 %1273
      %1275 = vrot.lane.b32.xlu0 %v1209, 40
      %v1276 = vpop.permute.xlu0 %1275
      %1277 = vrot.lane.b32.xlu0 %v1210, 40
      %v1278 = vpop.permute.xlu0 %1277
      %1279 = vrot.lane.b32.xlu0 %v1211, 40
      %v1280 = vpop.permute.xlu0 %1279
      %1281 = vrot.lane.b32.xlu0 %v1212, 40
      %v1282 = vpop.permute.xlu0 %1281
      %1283 = vrot.lane.b32.xlu0 %v1213, 40
      %v1284 = vpop.permute.xlu0 %1283
      %1285 = vrot.lane.b32.xlu0 %v1214, 40
      %v1286 = vpop.permute.xlu0 %1285
      %1287 = vrot.lane.b32.xlu0 %v1215, 40
      %v1288 = vpop.permute.xlu0 %1287
      %1289 = vrot.lane.b32.xlu0 %v1216, 40
      %v1290 = vpop.permute.xlu0 %1289
      %1291 = vrot.lane.b32.xlu0 %v1217, 40
      %v1292 = vpop.permute.xlu0 %1291
      %1293 = vrot.lane.b32.xlu0 %v1218, 40
      %v1294 = vpop.permute.xlu0 %1293
      %1295 = vrot.lane.b32.xlu0 %v1219, 40
      %v1296 = vpop.permute.xlu0 %1295
      %1297 = vrot.lane.b32.xlu0 %v1220, 40
      %v1298 = vpop.permute.xlu0 %1297
      %1299 = vrot.lane.b32.xlu0 %v1221, 40
      %v1300 = vpop.permute.xlu0 %1299
      %1301 = vrot.lane.b32.xlu0 %v1222, 40
      %v1302 = vpop.permute.xlu0 %1301
      %1303 = vrot.lane.b32.xlu0 %v1223, 40
      %v1304 = vpop.permute.xlu0 %1303
      %1305 = vrot.lane.b32.xlu0 %v1224, 40
      %v1306 = vpop.permute.xlu0 %1305
      %1307 = vrot.lane.b32.xlu0 %v1225, 40
      %v1308 = vpop.permute.xlu0 %1307
      %1309 = vrot.lane.b32.xlu0 %v1226, 40
      %v1310 = vpop.permute.xlu0 %1309
      %1311 = vrot.lane.b32.xlu0 %v1227, 40
      %v1312 = vpop.permute.xlu0 %1311
      %1313 = vrot.lane.b32.xlu0 %v1228, 40
      %v1314 = vpop.permute.xlu0 %1313
      %1315 = vrot.lane.b32.xlu0 %v1229, 40
      %v1316 = vpop.permute.xlu0 %1315
      %1317 = vrot.lane.b32.xlu0 %v1230, 40
      %v1318 = vpop.permute.xlu0 %1317
      %1319 = vrot.lane.b32.xlu0 %v1231, 40
      %v1320 = vpop.permute.xlu0 %1319
      %1321 = vrot.lane.b32.xlu0 %v1232, 40
      %v1322 = vpop.permute.xlu0 %1321
      %1323 = vrot.lane.b32.xlu0 %v1233, 40
      %v1324 = vpop.permute.xlu0 %1323
      %1325 = vrot.lane.b32.xlu0 %v1234, 40
      %v1326 = vpop.permute.xlu0 %1325
      %1327 = vrot.lane.b32.xlu0 %v1235, 40
      %v1328 = vpop.permute.xlu0 %1327
      %1329 = vrot.lane.b32.xlu0 %v1236, 40
      %v1330 = vpop.permute.xlu0 %1329
      %1331 = vrot.lane.b32.xlu0 %v1237, 40
      %v1332 = vpop.permute.xlu0 %1331
      %1333 = vrot.lane.b32.xlu0 %v1238, 40
      %v1334 = vpop.permute.xlu0 %1333
      %vm1367 = vcmask 392512
      %1368 = vst.msk [vmem:[#allocation3] sm:$0xff] %vm1367, %v1272
      %1369 = vst.msk [vmem:[#allocation3 + $0x8] sm:$0xff] %vm1367, %v1274
      %1370 = vst.msk [vmem:[#allocation3 + $0x10] sm:$0xff] %vm1367, %v1276
      %1371 = vst.msk [vmem:[#allocation3 + $0x18] sm:$0xff] %vm1367, %v1278
      %1372 = vst.msk [vmem:[#allocation3 + $0x20] sm:$0xff] %vm1367, %v1280
      %1373 = vst.msk [vmem:[#allocation3 + $0x28] sm:$0xff] %vm1367, %v1282
      %1374 = vst.msk [vmem:[#allocation3 + $0x30] sm:$0xff] %vm1367, %v1284
      %1375 = vst.msk [vmem:[#allocation3 + $0x38] sm:$0xff] %vm1367, %v1286
      %1376 = vst.msk [vmem:[#allocation3 + $0x40] sm:$0xff] %vm1367, %v1288
      %1377 = vst.msk [vmem:[#allocation3 + $0x48] sm:$0xff] %vm1367, %v1290
      %1378 = vst.msk [vmem:[#allocation3 + $0x50] sm:$0xff] %vm1367, %v1292
      %1379 = vst.msk [vmem:[#allocation3 + $0x58] sm:$0xff] %vm1367, %v1294
      %1380 = vst.msk [vmem:[#allocation3 + $0x60] sm:$0xff] %vm1367, %v1296
      %1381 = vst.msk [vmem:[#allocation3 + $0x68] sm:$0xff] %vm1367, %v1298
      %1382 = vst.msk [vmem:[#allocation3 + $0x70] sm:$0xff] %vm1367, %v1300
      %1383 = vst.msk [vmem:[#allocation3 + $0x78] sm:$0xff] %vm1367, %v1302
      %1384 = vst.msk [vmem:[#allocation3 + $0x80] sm:$0xff] %vm1367, %v1304
      %1385 = vst.msk [vmem:[#allocation3 + $0x88] sm:$0xff] %vm1367, %v1306
      %1386 = vst.msk [vmem:[#allocation3 + $0x90] sm:$0xff] %vm1367, %v1308
      %1387 = vst.msk [vmem:[#allocation3 + $0x98] sm:$0xff] %vm1367, %v1310
      %1388 = vst.msk [vmem:[#allocation3 + $0xa0] sm:$0xff] %vm1367, %v1312
      %1389 = vst.msk [vmem:[#allocation3 + $0xa8] sm:$0xff] %vm1367, %v1314
      %1390 = vst.msk [vmem:[#allocation3 + $0xb0] sm:$0xff] %vm1367, %v1316
      %1391 = vst.msk [vmem:[#allocation3 + $0xb8] sm:$0xff] %vm1367, %v1318
      %1392 = vst.msk [vmem:[#allocation3 + $0xc0] sm:$0xff] %vm1367, %v1320
      %1393 = vst.msk [vmem:[#allocation3 + $0xc8] sm:$0xff] %vm1367, %v1322
      %1394 = vst.msk [vmem:[#allocation3 + $0xd0] sm:$0xff] %vm1367, %v1324
      %1395 = vst.msk [vmem:[#allocation3 + $0xd8] sm:$0xff] %vm1367, %v1326
      %1396 = vst.msk [vmem:[#allocation3 + $0xe0] sm:$0xff] %vm1367, %v1328
      %1397 = vst.msk [vmem:[#allocation3 + $0xe8] sm:$0xff] %vm1367, %v1330
      %1398 = vst.msk [vmem:[#allocation3 + $0xf0] sm:$0xff] %vm1367, %v1332
      %1399 = vst.msk [vmem:[#allocation3 + $0xf8] sm:$0xff] %vm1367, %v1334
      %s1400 = scalar_lea.vmem [#allocation2], 48
      %v1401 = vld [vmem:[%s1400] sm:$0xff]
      %v1402 = vld [vmem:[%s1400 + $0x8] sm:$0xff]
      %v1403 = vld [vmem:[%s1400 + $0x18] sm:$0xff]
      %v1404 = vld [vmem:[%s1400 + $0x20] sm:$0xff]
      %v1405 = vld [vmem:[%s1400 + $0x30] sm:$0xff]
      %v1406 = vld [vmem:[%s1400 + $0x38] sm:$0xff]
      %v1407 = vld [vmem:[%s1400 + $0x48] sm:$0xff]
      %v1408 = vld [vmem:[%s1400 + $0x50] sm:$0xff]
      %v1409 = vld [vmem:[%s1400 + $0x60] sm:$0xff]
      %v1410 = vld [vmem:[%s1400 + $0x68] sm:$0xff]
      %v1411 = vld [vmem:[%s1400 + $0x78] sm:$0xff]
      %v1412 = vld [vmem:[%s1400 + $0x80] sm:$0xff]
      %v1413 = vld [vmem:[%s1400 + $0x90] sm:$0xff]
      %v1414 = vld [vmem:[%s1400 + $0x98] sm:$0xff]
      %v1415 = vld [vmem:[%s1400 + $0xa8] sm:$0xff]
      %v1416 = vld [vmem:[%s1400 + $0xb0] sm:$0xff]
      %v1417 = vld [vmem:[%s1400 + $0xc0] sm:$0xff]
      %v1418 = vld [vmem:[%s1400 + $0xc8] sm:$0xff]
      %v1419 = vld [vmem:[%s1400 + $0xd8] sm:$0xff]
      %v1420 = vld [vmem:[%s1400 + $0xe0] sm:$0xff]
      %v1421 = vld [vmem:[%s1400 + $0xf0] sm:$0xff]
      %v1422 = vld [vmem:[%s1400 + $0xf8] sm:$0xff]
      %v1423 = vld [vmem:[%s1400 + $0x108] sm:$0xff]
      %v1424 = vld [vmem:[%s1400 + $0x110] sm:$0xff]
      %v1425 = vld [vmem:[%s1400 + $0x120] sm:$0xff]
      %v1426 = vld [vmem:[%s1400 + $0x128] sm:$0xff]
      %v1427 = vld [vmem:[%s1400 + $0x138] sm:$0xff]
      %v1428 = vld [vmem:[%s1400 + $0x140] sm:$0xff]
      %v1429 = vld [vmem:[%s1400 + $0x150] sm:$0xff]
      %v1430 = vld [vmem:[%s1400 + $0x158] sm:$0xff]
      %v1431 = vld [vmem:[%s1400 + $0x168] sm:$0xff]
      %v1432 = vld [vmem:[%s1400 + $0x170] sm:$0xff]
      %1465 = vrot.lane.b32.xlu0 %v1401, 48
      %v1466 = vpop.permute.xlu0 %1465
      %1467 = vrot.lane.b32.xlu0 %v1402, 48
      %v1468 = vpop.permute.xlu0 %1467
      %1469 = vrot.lane.b32.xlu0 %v1403, 48
      %v1470 = vpop.permute.xlu0 %1469
      %1471 = vrot.lane.b32.xlu0 %v1404, 48
      %v1472 = vpop.permute.xlu0 %1471
      %1473 = vrot.lane.b32.xlu0 %v1405, 48
      %v1474 = vpop.permute.xlu0 %1473
      %1475 = vrot.lane.b32.xlu0 %v1406, 48
      %v1476 = vpop.permute.xlu0 %1475
      %1477 = vrot.lane.b32.xlu0 %v1407, 48
      %v1478 = vpop.permute.xlu0 %1477
      %1479 = vrot.lane.b32.xlu0 %v1408, 48
      %v1480 = vpop.permute.xlu0 %1479
      %1481 = vrot.lane.b32.xlu0 %v1409, 48
      %v1482 = vpop.permute.xlu0 %1481
      %1483 = vrot.lane.b32.xlu0 %v1410, 48
      %v1484 = vpop.permute.xlu0 %1483
      %1485 = vrot.lane.b32.xlu0 %v1411, 48
      %v1486 = vpop.permute.xlu0 %1485
      %1487 = vrot.lane.b32.xlu0 %v1412, 48
      %v1488 = vpop.permute.xlu0 %1487
      %1489 = vrot.lane.b32.xlu0 %v1413, 48
      %v1490 = vpop.permute.xlu0 %1489
      %1491 = vrot.lane.b32.xlu0 %v1414, 48
      %v1492 = vpop.permute.xlu0 %1491
      %1493 = vrot.lane.b32.xlu0 %v1415, 48
      %v1494 = vpop.permute.xlu0 %1493
      %1495 = vrot.lane.b32.xlu0 %v1416, 48
      %v1496 = vpop.permute.xlu0 %1495
      %1497 = vrot.lane.b32.xlu0 %v1417, 48
      %v1498 = vpop.permute.xlu0 %1497
      %1499 = vrot.lane.b32.xlu0 %v1418, 48
      %v1500 = vpop.permute.xlu0 %1499
      %1501 = vrot.lane.b32.xlu0 %v1419, 48
      %v1502 = vpop.permute.xlu0 %1501
      %1503 = vrot.lane.b32.xlu0 %v1420, 48
      %v1504 = vpop.permute.xlu0 %1503
      %1505 = vrot.lane.b32.xlu0 %v1421, 48
      %v1506 = vpop.permute.xlu0 %1505
      %1507 = vrot.lane.b32.xlu0 %v1422, 48
      %v1508 = vpop.permute.xlu0 %1507
      %1509 = vrot.lane.b32.xlu0 %v1423, 48
      %v1510 = vpop.permute.xlu0 %1509
      %1511 = vrot.lane.b32.xlu0 %v1424, 48
      %v1512 = vpop.permute.xlu0 %1511
      %1513 = vrot.lane.b32.xlu0 %v1425, 48
      %v1514 = vpop.permute.xlu0 %1513
      %1515 = vrot.lane.b32.xlu0 %v1426, 48
      %v1516 = vpop.permute.xlu0 %1515
      %1517 = vrot.lane.b32.xlu0 %v1427, 48
      %v1518 = vpop.permute.xlu0 %1517
      %1519 = vrot.lane.b32.xlu0 %v1428, 48
      %v1520 = vpop.permute.xlu0 %1519
      %1521 = vrot.lane.b32.xlu0 %v1429, 48
      %v1522 = vpop.permute.xlu0 %1521
      %1523 = vrot.lane.b32.xlu0 %v1430, 48
      %v1524 = vpop.permute.xlu0 %1523
      %1525 = vrot.lane.b32.xlu0 %v1431, 48
      %v1526 = vpop.permute.xlu0 %1525
      %1527 = vrot.lane.b32.xlu0 %v1432, 48
      %v1528 = vpop.permute.xlu0 %1527
      %vm1561 = vcmask 458112
      %1562 = vst.msk [vmem:[#allocation3] sm:$0xff] %vm1561, %v1466
      %1563 = vst.msk [vmem:[#allocation3 + $0x8] sm:$0xff] %vm1561, %v1468
      %1564 = vst.msk [vmem:[#allocation3 + $0x10] sm:$0xff] %vm1561, %v1470
      %1565 = vst.msk [vmem:[#allocation3 + $0x18] sm:$0xff] %vm1561, %v1472
      %1566 = vst.msk [vmem:[#allocation3 + $0x20] sm:$0xff] %vm1561, %v1474
      %1567 = vst.msk [vmem:[#allocation3 + $0x28] sm:$0xff] %vm1561, %v1476
      %1568 = vst.msk [vmem:[#allocation3 + $0x30] sm:$0xff] %vm1561, %v1478
      %1569 = vst.msk [vmem:[#allocation3 + $0x38] sm:$0xff] %vm1561, %v1480
      %1570 = vst.msk [vmem:[#allocation3 + $0x40] sm:$0xff] %vm1561, %v1482
      %1571 = vst.msk [vmem:[#allocation3 + $0x48] sm:$0xff] %vm1561, %v1484
      %1572 = vst.msk [vmem:[#allocation3 + $0x50] sm:$0xff] %vm1561, %v1486
      %1573 = vst.msk [vmem:[#allocation3 + $0x58] sm:$0xff] %vm1561, %v1488
      %1574 = vst.msk [vmem:[#allocation3 + $0x60] sm:$0xff] %vm1561, %v1490
      %1575 = vst.msk [vmem:[#allocation3 + $0x68] sm:$0xff] %vm1561, %v1492
      %1576 = vst.msk [vmem:[#allocation3 + $0x70] sm:$0xff] %vm1561, %v1494
      %1577 = vst.msk [vmem:[#allocation3 + $0x78] sm:$0xff] %vm1561, %v1496
      %1578 = vst.msk [vmem:[#allocation3 + $0x80] sm:$0xff] %vm1561, %v1498
      %1579 = vst.msk [vmem:[#allocation3 + $0x88] sm:$0xff] %vm1561, %v1500
      %1580 = vst.msk [vmem:[#allocation3 + $0x90] sm:$0xff] %vm1561, %v1502
      %1581 = vst.msk [vmem:[#allocation3 + $0x98] sm:$0xff] %vm1561, %v1504
      %1582 = vst.msk [vmem:[#allocation3 + $0xa0] sm:$0xff] %vm1561, %v1506
      %1583 = vst.msk [vmem:[#allocation3 + $0xa8] sm:$0xff] %vm1561, %v1508
      %1584 = vst.msk [vmem:[#allocation3 + $0xb0] sm:$0xff] %vm1561, %v1510
      %1585 = vst.msk [vmem:[#allocation3 + $0xb8] sm:$0xff] %vm1561, %v1512
      %1586 = vst.msk [vmem:[#allocation3 + $0xc0] sm:$0xff] %vm1561, %v1514
      %1587 = vst.msk [vmem:[#allocation3 + $0xc8] sm:$0xff] %vm1561, %v1516
      %1588 = vst.msk [vmem:[#allocation3 + $0xd0] sm:$0xff] %vm1561, %v1518
      %1589 = vst.msk [vmem:[#allocation3 + $0xd8] sm:$0xff] %vm1561, %v1520
      %1590 = vst.msk [vmem:[#allocation3 + $0xe0] sm:$0xff] %vm1561, %v1522
      %1591 = vst.msk [vmem:[#allocation3 + $0xe8] sm:$0xff] %vm1561, %v1524
      %1592 = vst.msk [vmem:[#allocation3 + $0xf0] sm:$0xff] %vm1561, %v1526
      %1593 = vst.msk [vmem:[#allocation3 + $0xf8] sm:$0xff] %vm1561, %v1528
      %v1594 = vld [vmem:[%s1400 + $0x1] sm:$0xff]
      %v1595 = vld [vmem:[%s1400 + $0x9] sm:$0xff]
      %v1596 = vld [vmem:[%s1400 + $0x19] sm:$0xff]
      %v1597 = vld [vmem:[%s1400 + $0x21] sm:$0xff]
      %v1598 = vld [vmem:[%s1400 + $0x31] sm:$0xff]
      %v1599 = vld [vmem:[%s1400 + $0x39] sm:$0xff]
      %v1600 = vld [vmem:[%s1400 + $0x49] sm:$0xff]
      %v1601 = vld [vmem:[%s1400 + $0x51] sm:$0xff]
      %v1602 = vld [vmem:[%s1400 + $0x61] sm:$0xff]
      %v1603 = vld [vmem:[%s1400 + $0x69] sm:$0xff]
      %v1604 = vld [vmem:[%s1400 + $0x79] sm:$0xff]
      %v1605 = vld [vmem:[%s1400 + $0x81] sm:$0xff]
      %v1606 = vld [vmem:[%s1400 + $0x91] sm:$0xff]
      %v1607 = vld [vmem:[%s1400 + $0x99] sm:$0xff]
      %v1608 = vld [vmem:[%s1400 + $0xa9] sm:$0xff]
      %v1609 = vld [vmem:[%s1400 + $0xb1] sm:$0xff]
      %v1610 = vld [vmem:[%s1400 + $0xc1] sm:$0xff]
      %v1611 = vld [vmem:[%s1400 + $0xc9] sm:$0xff]
      %v1612 = vld [vmem:[%s1400 + $0xd9] sm:$0xff]
      %v1613 = vld [vmem:[%s1400 + $0xe1] sm:$0xff]
      %v1614 = vld [vmem:[%s1400 + $0xf1] sm:$0xff]
      %v1615 = vld [vmem:[%s1400 + $0xf9] sm:$0xff]
      %v1616 = vld [vmem:[%s1400 + $0x109] sm:$0xff]
      %v1617 = vld [vmem:[%s1400 + $0x111] sm:$0xff]
      %v1618 = vld [vmem:[%s1400 + $0x121] sm:$0xff]
      %v1619 = vld [vmem:[%s1400 + $0x129] sm:$0xff]
      %v1620 = vld [vmem:[%s1400 + $0x139] sm:$0xff]
      %v1621 = vld [vmem:[%s1400 + $0x141] sm:$0xff]
      %v1622 = vld [vmem:[%s1400 + $0x151] sm:$0xff]
      %v1623 = vld [vmem:[%s1400 + $0x159] sm:$0xff]
      %v1624 = vld [vmem:[%s1400 + $0x169] sm:$0xff]
      %v1625 = vld [vmem:[%s1400 + $0x171] sm:$0xff]
      %1658 = vrot.lane.b32.xlu0 %v1594, 56
      %v1659 = vpop.permute.xlu0 %1658
      %1660 = vrot.lane.b32.xlu0 %v1595, 56
      %v1661 = vpop.permute.xlu0 %1660
      %1662 = vrot.lane.b32.xlu0 %v1596, 56
      %v1663 = vpop.permute.xlu0 %1662
      %1664 = vrot.lane.b32.xlu0 %v1597, 56
      %v1665 = vpop.permute.xlu0 %1664
      %1666 = vrot.lane.b32.xlu0 %v1598, 56
      %v1667 = vpop.permute.xlu0 %1666
      %1668 = vrot.lane.b32.xlu0 %v1599, 56
      %v1669 = vpop.permute.xlu0 %1668
      %1670 = vrot.lane.b32.xlu0 %v1600, 56
      %v1671 = vpop.permute.xlu0 %1670
      %1672 = vrot.lane.b32.xlu0 %v1601, 56
      %v1673 = vpop.permute.xlu0 %1672
      %1674 = vrot.lane.b32.xlu0 %v1602, 56
      %v1675 = vpop.permute.xlu0 %1674
      %1676 = vrot.lane.b32.xlu0 %v1603, 56
      %v1677 = vpop.permute.xlu0 %1676
      %1678 = vrot.lane.b32.xlu0 %v1604, 56
      %v1679 = vpop.permute.xlu0 %1678
      %1680 = vrot.lane.b32.xlu0 %v1605, 56
      %v1681 = vpop.permute.xlu0 %1680
      %1682 = vrot.lane.b32.xlu0 %v1606, 56
      %v1683 = vpop.permute.xlu0 %1682
      %1684 = vrot.lane.b32.xlu0 %v1607, 56
      %v1685 = vpop.permute.xlu0 %1684
      %1686 = vrot.lane.b32.xlu0 %v1608, 56
      %v1687 = vpop.permute.xlu0 %1686
      %1688 = vrot.lane.b32.xlu0 %v1609, 56
      %v1689 = vpop.permute.xlu0 %1688
      %1690 = vrot.lane.b32.xlu0 %v1610, 56
      %v1691 = vpop.permute.xlu0 %1690
      %1692 = vrot.lane.b32.xlu0 %v1611, 56
      %v1693 = vpop.permute.xlu0 %1692
      %1694 = vrot.lane.b32.xlu0 %v1612, 56
      %v1695 = vpop.permute.xlu0 %1694
      %1696 = vrot.lane.b32.xlu0 %v1613, 56
      %v1697 = vpop.permute.xlu0 %1696
      %1698 = vrot.lane.b32.xlu0 %v1614, 56
      %v1699 = vpop.permute.xlu0 %1698
      %1700 = vrot.lane.b32.xlu0 %v1615, 56
      %v1701 = vpop.permute.xlu0 %1700
      %1702 = vrot.lane.b32.xlu0 %v1616, 56
      %v1703 = vpop.permute.xlu0 %1702
      %1704 = vrot.lane.b32.xlu0 %v1617, 56
      %v1705 = vpop.permute.xlu0 %1704
      %1706 = vrot.lane.b32.xlu0 %v1618, 56
      %v1707 = vpop.permute.xlu0 %1706
      %1708 = vrot.lane.b32.xlu0 %v1619, 56
      %v1709 = vpop.permute.xlu0 %1708
      %1710 = vrot.lane.b32.xlu0 %v1620, 56
      %v1711 = vpop.permute.xlu0 %1710
      %1712 = vrot.lane.b32.xlu0 %v1621, 56
      %v1713 = vpop.permute.xlu0 %1712
      %1714 = vrot.lane.b32.xlu0 %v1622, 56
      %v1715 = vpop.permute.xlu0 %1714
      %1716 = vrot.lane.b32.xlu0 %v1623, 56
      %v1717 = vpop.permute.xlu0 %1716
      %1718 = vrot.lane.b32.xlu0 %v1624, 56
      %v1719 = vpop.permute.xlu0 %1718
      %1720 = vrot.lane.b32.xlu0 %v1625, 56
      %v1721 = vpop.permute.xlu0 %1720
      %vm1754 = vcmask 523712
      %1755 = vst.msk [vmem:[#allocation3] sm:$0xff] %vm1754, %v1659
      %1756 = vst.msk [vmem:[#allocation3 + $0x8] sm:$0xff] %vm1754, %v1661
      %1757 = vst.msk [vmem:[#allocation3 + $0x10] sm:$0xff] %vm1754, %v1663
      %1758 = vst.msk [vmem:[#allocation3 + $0x18] sm:$0xff] %vm1754, %v1665
      %1759 = vst.msk [vmem:[#allocation3 + $0x20] sm:$0xff] %vm1754, %v1667
      %1760 = vst.msk [vmem:[#allocation3 + $0x28] sm:$0xff] %vm1754, %v1669
      %1761 = vst.msk [vmem:[#allocation3 + $0x30] sm:$0xff] %vm1754, %v1671
      %1762 = vst.msk [vmem:[#allocation3 + $0x38] sm:$0xff] %vm1754, %v1673
      %1763 = vst.msk [vmem:[#allocation3 + $0x40] sm:$0xff] %vm1754, %v1675
      %1764 = vst.msk [vmem:[#allocation3 + $0x48] sm:$0xff] %vm1754, %v1677
      %1765 = vst.msk [vmem:[#allocation3 + $0x50] sm:$0xff] %vm1754, %v1679
      %1766 = vst.msk [vmem:[#allocation3 + $0x58] sm:$0xff] %vm1754, %v1681
      %1767 = vst.msk [vmem:[#allocation3 + $0x60] sm:$0xff] %vm1754, %v1683
      %1768 = vst.msk [vmem:[#allocation3 + $0x68] sm:$0xff] %vm1754, %v1685
      %1769 = vst.msk [vmem:[#allocation3 + $0x70] sm:$0xff] %vm1754, %v1687
      %1770 = vst.msk [vmem:[#allocation3 + $0x78] sm:$0xff] %vm1754, %v1689
      %1771 = vst.msk [vmem:[#allocation3 + $0x80] sm:$0xff] %vm1754, %v1691
      %1772 = vst.msk [vmem:[#allocation3 + $0x88] sm:$0xff] %vm1754, %v1693
      %1773 = vst.msk [vmem:[#allocation3 + $0x90] sm:$0xff] %vm1754, %v1695
      %1774 = vst.msk [vmem:[#allocation3 + $0x98] sm:$0xff] %vm1754, %v1697
      %1775 = vst.msk [vmem:[#allocation3 + $0xa0] sm:$0xff] %vm1754, %v1699
      %1776 = vst.msk [vmem:[#allocation3 + $0xa8] sm:$0xff] %vm1754, %v1701
      %1777 = vst.msk [vmem:[#allocation3 + $0xb0] sm:$0xff] %vm1754, %v1703
      %1778 = vst.msk [vmem:[#allocation3 + $0xb8] sm:$0xff] %vm1754, %v1705
      %1779 = vst.msk [vmem:[#allocation3 + $0xc0] sm:$0xff] %vm1754, %v1707
      %1780 = vst.msk [vmem:[#allocation3 + $0xc8] sm:$0xff] %vm1754, %v1709
      %1781 = vst.msk [vmem:[#allocation3 + $0xd0] sm:$0xff] %vm1754, %v1711
      %1782 = vst.msk [vmem:[#allocation3 + $0xd8] sm:$0xff] %vm1754, %v1713
      %1783 = vst.msk [vmem:[#allocation3 + $0xe0] sm:$0xff] %vm1754, %v1715
      %1784 = vst.msk [vmem:[#allocation3 + $0xe8] sm:$0xff] %vm1754, %v1717
      %1785 = vst.msk [vmem:[#allocation3 + $0xf0] sm:$0xff] %vm1754, %v1719
      %1786 = vst.msk [vmem:[#allocation3 + $0xf8] sm:$0xff] %vm1754, %v1721
      %v1787 = vld [vmem:[%s1400 + $0x2] sm:$0xff]
      %v1788 = vld [vmem:[%s1400 + $0xa] sm:$0xff]
      %v1789 = vld [vmem:[%s1400 + $0x1a] sm:$0xff]
      %v1790 = vld [vmem:[%s1400 + $0x22] sm:$0xff]
      %v1791 = vld [vmem:[%s1400 + $0x32] sm:$0xff]
      %v1792 = vld [vmem:[%s1400 + $0x3a] sm:$0xff]
      %v1793 = vld [vmem:[%s1400 + $0x4a] sm:$0xff]
      %v1794 = vld [vmem:[%s1400 + $0x52] sm:$0xff]
      %v1795 = vld [vmem:[%s1400 + $0x62] sm:$0xff]
      %v1796 = vld [vmem:[%s1400 + $0x6a] sm:$0xff]
      %v1797 = vld [vmem:[%s1400 + $0x7a] sm:$0xff]
      %v1798 = vld [vmem:[%s1400 + $0x82] sm:$0xff]
      %v1799 = vld [vmem:[%s1400 + $0x92] sm:$0xff]
      %v1800 = vld [vmem:[%s1400 + $0x9a] sm:$0xff]
      %v1801 = vld [vmem:[%s1400 + $0xaa] sm:$0xff]
      %v1802 = vld [vmem:[%s1400 + $0xb2] sm:$0xff]
      %v1803 = vld [vmem:[%s1400 + $0xc2] sm:$0xff]
      %v1804 = vld [vmem:[%s1400 + $0xca] sm:$0xff]
      %v1805 = vld [vmem:[%s1400 + $0xda] sm:$0xff]
      %v1806 = vld [vmem:[%s1400 + $0xe2] sm:$0xff]
      %v1807 = vld [vmem:[%s1400 + $0xf2] sm:$0xff]
      %v1808 = vld [vmem:[%s1400 + $0xfa] sm:$0xff]
      %v1809 = vld [vmem:[%s1400 + $0x10a] sm:$0xff]
      %v1810 = vld [vmem:[%s1400 + $0x112] sm:$0xff]
      %v1811 = vld [vmem:[%s1400 + $0x122] sm:$0xff]
      %v1812 = vld [vmem:[%s1400 + $0x12a] sm:$0xff]
      %v1813 = vld [vmem:[%s1400 + $0x13a] sm:$0xff]
      %v1814 = vld [vmem:[%s1400 + $0x142] sm:$0xff]
      %v1815 = vld [vmem:[%s1400 + $0x152] sm:$0xff]
      %v1816 = vld [vmem:[%s1400 + $0x15a] sm:$0xff]
      %v1817 = vld [vmem:[%s1400 + $0x16a] sm:$0xff]
      %v1818 = vld [vmem:[%s1400 + $0x172] sm:$0xff]
      %1851 = vrot.lane.b32.xlu0 %v1787, 64
      %v1852 = vpop.permute.xlu0 %1851
      %1853 = vrot.lane.b32.xlu0 %v1788, 64
      %v1854 = vpop.permute.xlu0 %1853
      %1855 = vrot.lane.b32.xlu0 %v1789, 64
      %v1856 = vpop.permute.xlu0 %1855
      %1857 = vrot.lane.b32.xlu0 %v1790, 64
      %v1858 = vpop.permute.xlu0 %1857
      %1859 = vrot.lane.b32.xlu0 %v1791, 64
      %v1860 = vpop.permute.xlu0 %1859
      %1861 = vrot.lane.b32.xlu0 %v1792, 64
      %v1862 = vpop.permute.xlu0 %1861
      %1863 = vrot.lane.b32.xlu0 %v1793, 64
      %v1864 = vpop.permute.xlu0 %1863
      %1865 = vrot.lane.b32.xlu0 %v1794, 64
      %v1866 = vpop.permute.xlu0 %1865
      %1867 = vrot.lane.b32.xlu0 %v1795, 64
      %v1868 = vpop.permute.xlu0 %1867
      %1869 = vrot.lane.b32.xlu0 %v1796, 64
      %v1870 = vpop.permute.xlu0 %1869
      %1871 = vrot.lane.b32.xlu0 %v1797, 64
      %v1872 = vpop.permute.xlu0 %1871
      %1873 = vrot.lane.b32.xlu0 %v1798, 64
      %v1874 = vpop.permute.xlu0 %1873
      %1875 = vrot.lane.b32.xlu0 %v1799, 64
      %v1876 = vpop.permute.xlu0 %1875
      %1877 = vrot.lane.b32.xlu0 %v1800, 64
      %v1878 = vpop.permute.xlu0 %1877
      %1879 = vrot.lane.b32.xlu0 %v1801, 64
      %v1880 = vpop.permute.xlu0 %1879
      %1881 = vrot.lane.b32.xlu0 %v1802, 64
      %v1882 = vpop.permute.xlu0 %1881
      %1883 = vrot.lane.b32.xlu0 %v1803, 64
      %v1884 = vpop.permute.xlu0 %1883
      %1885 = vrot.lane.b32.xlu0 %v1804, 64
      %v1886 = vpop.permute.xlu0 %1885
      %1887 = vrot.lane.b32.xlu0 %v1805, 64
      %v1888 = vpop.permute.xlu0 %1887
      %1889 = vrot.lane.b32.xlu0 %v1806, 64
      %v1890 = vpop.permute.xlu0 %1889
      %1891 = vrot.lane.b32.xlu0 %v1807, 64
      %v1892 = vpop.permute.xlu0 %1891
      %1893 = vrot.lane.b32.xlu0 %v1808, 64
      %v1894 = vpop.permute.xlu0 %1893
      %1895 = vrot.lane.b32.xlu0 %v1809, 64
      %v1896 = vpop.permute.xlu0 %1895
      %1897 = vrot.lane.b32.xlu0 %v1810, 64
      %v1898 = vpop.permute.xlu0 %1897
      %1899 = vrot.lane.b32.xlu0 %v1811, 64
      %v1900 = vpop.permute.xlu0 %1899
      %1901 = vrot.lane.b32.xlu0 %v1812, 64
      %v1902 = vpop.permute.xlu0 %1901
      %1903 = vrot.lane.b32.xlu0 %v1813, 64
      %v1904 = vpop.permute.xlu0 %1903
      %1905 = vrot.lane.b32.xlu0 %v1814, 64
      %v1906 = vpop.permute.xlu0 %1905
      %1907 = vrot.lane.b32.xlu0 %v1815, 64
      %v1908 = vpop.permute.xlu0 %1907
      %1909 = vrot.lane.b32.xlu0 %v1816, 64
      %v1910 = vpop.permute.xlu0 %1909
      %1911 = vrot.lane.b32.xlu0 %v1817, 64
      %v1912 = vpop.permute.xlu0 %1911
      %1913 = vrot.lane.b32.xlu0 %v1818, 64
      %v1914 = vpop.permute.xlu0 %1913
      %vm1947 = vcmask 589312
      %1948 = vst.msk [vmem:[#allocation3] sm:$0xff] %vm1947, %v1852
      %1949 = vst.msk [vmem:[#allocation3 + $0x8] sm:$0xff] %vm1947, %v1854
      %1950 = vst.msk [vmem:[#allocation3 + $0x10] sm:$0xff] %vm1947, %v1856
      %1951 = vst.msk [vmem:[#allocation3 + $0x18] sm:$0xff] %vm1947, %v1858
      %1952 = vst.msk [vmem:[#allocation3 + $0x20] sm:$0xff] %vm1947, %v1860
      %1953 = vst.msk [vmem:[#allocation3 + $0x28] sm:$0xff] %vm1947, %v1862
      %1954 = vst.msk [vmem:[#allocation3 + $0x30] sm:$0xff] %vm1947, %v1864
      %1955 = vst.msk [vmem:[#allocation3 + $0x38] sm:$0xff] %vm1947, %v1866
      %1956 = vst.msk [vmem:[#allocation3 + $0x40] sm:$0xff] %vm1947, %v1868
      %1957 = vst.msk [vmem:[#allocation3 + $0x48] sm:$0xff] %vm1947, %v1870
      %1958 = vst.msk [vmem:[#allocation3 + $0x50] sm:$0xff] %vm1947, %v1872
      %1959 = vst.msk [vmem:[#allocation3 + $0x58] sm:$0xff] %vm1947, %v1874
      %1960 = vst.msk [vmem:[#allocation3 + $0x60] sm:$0xff] %vm1947, %v1876
      %1961 = vst.msk [vmem:[#allocation3 + $0x68] sm:$0xff] %vm1947, %v1878
      %1962 = vst.msk [vmem:[#allocation3 + $0x70] sm:$0xff] %vm1947, %v1880
      %1963 = vst.msk [vmem:[#allocation3 + $0x78] sm:$0xff] %vm1947, %v1882
      %1964 = vst.msk [vmem:[#allocation3 + $0x80] sm:$0xff] %vm1947, %v1884
      %1965 = vst.msk [vmem:[#allocation3 + $0x88] sm:$0xff] %vm1947, %v1886
      %1966 = vst.msk [vmem:[#allocation3 + $0x90] sm:$0xff] %vm1947, %v1888
      %1967 = vst.msk [vmem:[#allocation3 + $0x98] sm:$0xff] %vm1947, %v1890
      %1968 = vst.msk [vmem:[#allocation3 + $0xa0] sm:$0xff] %vm1947, %v1892
      %1969 = vst.msk [vmem:[#allocation3 + $0xa8] sm:$0xff] %vm1947, %v1894
      %1970 = vst.msk [vmem:[#allocation3 + $0xb0] sm:$0xff] %vm1947, %v1896
      %1971 = vst.msk [vmem:[#allocation3 + $0xb8] sm:$0xff] %vm1947, %v1898
      %1972 = vst.msk [vmem:[#allocation3 + $0xc0] sm:$0xff] %vm1947, %v1900
      %1973 = vst.msk [vmem:[#allocation3 + $0xc8] sm:$0xff] %vm1947, %v1902
      %1974 = vst.msk [vmem:[#allocation3 + $0xd0] sm:$0xff] %vm1947, %v1904
      %1975 = vst.msk [vmem:[#allocation3 + $0xd8] sm:$0xff] %vm1947, %v1906
      %1976 = vst.msk [vmem:[#allocation3 + $0xe0] sm:$0xff] %vm1947, %v1908
      %1977 = vst.msk [vmem:[#allocation3 + $0xe8] sm:$0xff] %vm1947, %v1910
      %1978 = vst.msk [vmem:[#allocation3 + $0xf0] sm:$0xff] %vm1947, %v1912
      %1979 = vst.msk [vmem:[#allocation3 + $0xf8] sm:$0xff] %vm1947, %v1914
      %v1980 = vld [vmem:[#allocation3] sm:$0xff]
      %v1981 = vld [vmem:[#allocation3 + $0x8] sm:$0xff]
      %v1982 = vld [vmem:[#allocation3 + $0x10] sm:$0xff]
      %v1983 = vld [vmem:[#allocation3 + $0x18] sm:$0xff]
      %v1984 = vld [vmem:[#allocation3 + $0x20] sm:$0xff]
      %v1985 = vld [vmem:[#allocation3 + $0x28] sm:$0xff]
      %v1986 = vld [vmem:[#allocation3 + $0x30] sm:$0xff]
      %v1987 = vld [vmem:[#allocation3 + $0x38] sm:$0xff]
      %v1988 = vld [vmem:[#allocation3 + $0x40] sm:$0xff]
      %v1989 = vld [vmem:[#allocation3 + $0x48] sm:$0xff]
      %v1990 = vld [vmem:[#allocation3 + $0x50] sm:$0xff]
      %v1991 = vld [vmem:[#allocation3 + $0x58] sm:$0xff]
      %v1992 = vld [vmem:[#allocation3 + $0x60] sm:$0xff]
      %v1993 = vld [vmem:[#allocation3 + $0x68] sm:$0xff]
      %v1994 = vld [vmem:[#allocation3 + $0x70] sm:$0xff]
      %v1995 = vld [vmem:[#allocation3 + $0x78] sm:$0xff]
      %v1996 = vld [vmem:[#allocation3 + $0x80] sm:$0xff]
      %v1997 = vld [vmem:[#allocation3 + $0x88] sm:$0xff]
      %v1998 = vld [vmem:[#allocation3 + $0x90] sm:$0xff]
      %v1999 = vld [vmem:[#allocation3 + $0x98] sm:$0xff]
      %v2000 = vld [vmem:[#allocation3 + $0xa0] sm:$0xff]
      %v2001 = vld [vmem:[#allocation3 + $0xa8] sm:$0xff]
      %v2002 = vld [vmem:[#allocation3 + $0xb0] sm:$0xff]
      %v2003 = vld [vmem:[#allocation3 + $0xb8] sm:$0xff]
      %v2004 = vld [vmem:[#allocation3 + $0xc0] sm:$0xff]
      %v2005 = vld [vmem:[#allocation3 + $0xc8] sm:$0xff]
      %v2006 = vld [vmem:[#allocation3 + $0xd0] sm:$0xff]
      %v2007 = vld [vmem:[#allocation3 + $0xd8] sm:$0xff]
      %v2008 = vld [vmem:[#allocation3 + $0xe0] sm:$0xff]
      %v2009 = vld [vmem:[#allocation3 + $0xe8] sm:$0xff]
      %v2010 = vld [vmem:[#allocation3 + $0xf0] sm:$0xff]
      %v2011 = vld [vmem:[#allocation3 + $0xf8] sm:$0xff]
      %v2012 = vpack.c.bf16 %v1981, %v1980
      %v2013 = vpack.c.bf16 %v1983, %v1982
      %v2014 = vpack.c.bf16 %v1985, %v1984
      %v2015 = vpack.c.bf16 %v1987, %v1986
      %v2016 = vpack.c.bf16 %v1989, %v1988
      %v2017 = vpack.c.bf16 %v1991, %v1990
      %v2018 = vpack.c.bf16 %v1993, %v1992
      %v2019 = vpack.c.bf16 %v1995, %v1994
      %v2020 = vpack.c.bf16 %v1997, %v1996
      %v2021 = vpack.c.bf16 %v1999, %v1998
      %v2022 = vpack.c.bf16 %v2001, %v2000
      %v2023 = vpack.c.bf16 %v2003, %v2002
      %v2024 = vpack.c.bf16 %v2005, %v2004
      %v2025 = vpack.c.bf16 %v2007, %v2006
      %v2026 = vpack.c.bf16 %v2009, %v2008
      %v2027 = vpack.c.bf16 %v2011, %v2010
      %v2028 = vld [vmem:[%s1] sm:$0xf]
      %v2029 = vld [vmem:[%s1 + $0x4] sm:$0xf]
      %v2030 = vld [vmem:[%s1 + $0x8] sm:$0xf]
      %v2031 = vld [vmem:[%s1 + $0xc] sm:$0xf]
      %v2032 = vld [vmem:[%s1 + $0x10] sm:$0xf]
      %v2033 = vld [vmem:[%s1 + $0x14] sm:$0xf]
      %v2034 = vld [vmem:[%s1 + $0x18] sm:$0xf]
      %v2035 = vld [vmem:[%s1 + $0x1c] sm:$0xf]
      %v2036 = vld [vmem:[%s1 + $0x20] sm:$0xf]
      %v2037 = vld [vmem:[%s1 + $0x24] sm:$0xf]
      %v2038 = vld [vmem:[%s1 + $0x28] sm:$0xf]
      %v2039 = vld [vmem:[%s1 + $0x2c] sm:$0xf]
      %v2040 = vld [vmem:[%s1 + $0x30] sm:$0xf]
      %v2041 = vld [vmem:[%s1 + $0x34] sm:$0xf]
      %v2042 = vld [vmem:[%s1 + $0x38] sm:$0xf]
      %v2043 = vld [vmem:[%s1 + $0x3c] sm:$0xf]
      %v2044 = vld [vmem:[%s2] sm:$0x1]
      %v2046 = vlaneseq
      %v2047 = vshrl.u32 %v2046, 7
      %v2048 = vsub.s32 0, %v2047
      %v2049 = vrot.slane %v2044, %v2048
      %v2067 = vunpack.c.l.b16 %v2028
      %v2068 = vunpack.c.l.b16 %v2029
      %v2069 = vunpack.c.l.b16 %v2030
      %v2070 = vunpack.c.l.b16 %v2031
      %v2071 = vunpack.c.l.b16 %v2032
      %v2072 = vunpack.c.l.b16 %v2033
      %v2073 = vunpack.c.l.b16 %v2034
      %v2074 = vunpack.c.l.b16 %v2035
      %v2075 = vunpack.c.l.b16 %v2036
      %v2076 = vunpack.c.l.b16 %v2037
      %v2077 = vunpack.c.l.b16 %v2038
      %v2078 = vunpack.c.l.b16 %v2039
      %v2079 = vunpack.c.l.b16 %v2040
      %v2080 = vunpack.c.l.b16 %v2041
      %v2081 = vunpack.c.l.b16 %v2042
      %v2082 = vunpack.c.l.b16 %v2043
      %v2083 = vpack.c.b16 %v2068, %v2067
      %v2084 = vpack.c.b16 %v2070, %v2069
      %v2085 = vpack.c.b16 %v2072, %v2071
      %v2086 = vpack.c.b16 %v2074, %v2073
      %v2087 = vpack.c.b16 %v2076, %v2075
      %v2088 = vpack.c.b16 %v2078, %v2077
      %v2089 = vpack.c.b16 %v2080, %v2079
      %v2090 = vpack.c.b16 %v2082, %v2081
      %2099 = vmatprep.subr.bf16.mxu0 0
      %2100 = vmatpush1.bf16.msra.mxu0 %v2090
      %2101 = vmatprep.subr.bf16.mxu0 0
      %2102 = vmatpush1.bf16.msra.mxu0 %v2089
      %2103 = vmatprep.subr.bf16.mxu0 0
      %2104 = vmatpush1.bf16.msra.mxu0 %v2088
      %2105 = vmatprep.subr.bf16.mxu0 0
      %2106 = vmatpush1.bf16.msra.mxu0 %v2087
      %2107 = vmatprep.subr.bf16.mxu0 0
      %2108 = vmatpush1.bf16.msra.mxu0 %v2086
      %2109 = vmatprep.subr.bf16.mxu0 0
      %2110 = vmatpush1.bf16.msra.mxu0 %v2085
      %2111 = vmatprep.subr.bf16.mxu0 0
      %2112 = vmatpush1.bf16.msra.mxu0 %v2084
      %2113 = vmatprep.subr.bf16.mxu0 0
      %2114 = vmatpush1.bf16.msra.mxu0 %v2083
      %2115 = vmatprep.subr.bf16.mxu0 0
      %2116 = vmatpush2.bf16.msra.mxu0 0
      %2117 = vmatprep.subr.bf16.mxu0 0
      %2118 = vmatpush2.bf16.msra.mxu0 0
      %2119 = vmatprep.subr.bf16.mxu0 0
      %2120 = vmatpush2.bf16.msra.mxu0 0
      %2121 = vmatprep.subr.bf16.mxu0 0
      %2122 = vmatpush2.bf16.msra.mxu0 0
      %2123 = vmatprep.subr.bf16.mxu0 0
      %2124 = vmatpush2.bf16.msra.mxu0 0
      %2125 = vmatprep.subr.bf16.mxu0 0
      %2126 = vmatpush2.bf16.msra.mxu0 0
      %2127 = vmatprep.subr.bf16.mxu0 0
      %2128 = vmatpush2.bf16.msra.mxu0 0
      %2129 = vmatprep.subr.bf16.mxu0 0
      %2130 = vmatpush2.bf16.msra.mxu0 0
      %2131 = vmatprep.mubr.bf16.mxu0 0
      %2132 = vmatmul.mubr.bf16.gmra.mxu0 %v2012
      %v2133 = vpop.f32.mrf.mxu0
      %v2134 = vadd.f32 %v2049, %v2133
      %v2135 = vpop.f32.mrf.mxu0
      %v2136 = vpop.f32.mrf.mxu0
      %v2137 = vadd.f32 %v2049, %v2136
      %v2138 = vpop.f32.mrf.mxu0
      %2139 = vmatprep.mubr.bf16.mxu0 0
      %2140 = vmatmul.mubr.bf16.gmra.mxu0 %v2013
      %v2141 = vpop.f32.mrf.mxu0
      %v2142 = vadd.f32 %v2049, %v2141
      %v2143 = vpop.f32.mrf.mxu0
      %v2144 = vpop.f32.mrf.mxu0
      %v2145 = vadd.f32 %v2049, %v2144
      %v2146 = vpop.f32.mrf.mxu0
      %2147 = vmatprep.mubr.bf16.mxu0 0
      %2148 = vmatmul.mubr.bf16.gmra.mxu0 %v2014
      %v2149 = vpop.f32.mrf.mxu0
      %v2150 = vadd.f32 %v2049, %v2149
      %v2151 = vpop.f32.mrf.mxu0
      %v2152 = vpop.f32.mrf.mxu0
      %v2153 = vadd.f32 %v2049, %v2152
      %v2154 = vpop.f32.mrf.mxu0
      %2155 = vmatprep.mubr.bf16.mxu0 0
      %2156 = vmatmul.mubr.bf16.gmra.mxu0 %v2015
      %v2157 = vpop.f32.mrf.mxu0
      %v2158 = vadd.f32 %v2049, %v2157
      %v2159 = vpop.f32.mrf.mxu0
      %v2160 = vpop.f32.mrf.mxu0
      %v2161 = vadd.f32 %v2049, %v2160
      %v2162 = vpop.f32.mrf.mxu0
      %2163 = vmatprep.mubr.bf16.mxu0 0
      %2164 = vmatmul.mubr.bf16.gmra.mxu0 %v2016
      %v2165 = vpop.f32.mrf.mxu0
      %v2166 = vadd.f32 %v2049, %v2165
      %v2167 = vpop.f32.mrf.mxu0
      %v2168 = vpop.f32.mrf.mxu0
      %v2169 = vadd.f32 %v2049, %v2168
      %v2170 = vpop.f32.mrf.mxu0
      %2171 = vmatprep.mubr.bf16.mxu0 0
      %2172 = vmatmul.mubr.bf16.gmra.mxu0 %v2017
      %v2173 = vpop.f32.mrf.mxu0
      %v2174 = vadd.f32 %v2049, %v2173
      %v2175 = vpop.f32.mrf.mxu0
      %v2176 = vpop.f32.mrf.mxu0
      %v2177 = vadd.f32 %v2049, %v2176
      %v2178 = vpop.f32.mrf.mxu0
      %2179 = vmatprep.mubr.bf16.mxu0 0
      %2180 = vmatmul.mubr.bf16.gmra.mxu0 %v2018
      %v2181 = vpop.f32.mrf.mxu0
      %v2182 = vadd.f32 %v2049, %v2181
      %v2183 = vpop.f32.mrf.mxu0
      %v2184 = vpop.f32.mrf.mxu0
      %v2185 = vadd.f32 %v2049, %v2184
      %v2186 = vpop.f32.mrf.mxu0
      %2187 = vmatprep.mubr.bf16.mxu0 0
      %2188 = vmatmul.mubr.bf16.gmra.mxu0 %v2019
      %v2189 = vpop.f32.mrf.mxu0
      %v2190 = vadd.f32 %v2049, %v2189
      %v2191 = vpop.f32.mrf.mxu0
      %v2192 = vpop.f32.mrf.mxu0
      %v2193 = vadd.f32 %v2049, %v2192
      %v2194 = vpop.f32.mrf.mxu0
      %2195 = vmatprep.mubr.bf16.mxu0 0
      %2196 = vmatmul.mubr.bf16.gmra.mxu0 %v2020
      %v2197 = vpop.f32.mrf.mxu0
      %v2198 = vadd.f32 %v2049, %v2197
      %v2199 = vpop.f32.mrf.mxu0
      %v2200 = vpop.f32.mrf.mxu0
      %v2201 = vadd.f32 %v2049, %v2200
      %v2202 = vpop.f32.mrf.mxu0
      %2203 = vmatprep.mubr.bf16.mxu0 0
      %2204 = vmatmul.mubr.bf16.gmra.mxu0 %v2021
      %v2205 = vpop.f32.mrf.mxu0
      %v2206 = vadd.f32 %v2049, %v2205
      %v2207 = vpop.f32.mrf.mxu0
      %v2208 = vpop.f32.mrf.mxu0
      %v2209 = vadd.f32 %v2049, %v2208
      %v2210 = vpop.f32.mrf.mxu0
      %2211 = vmatprep.mubr.bf16.mxu0 0
      %2212 = vmatmul.mubr.bf16.gmra.mxu0 %v2022
      %v2213 = vpop.f32.mrf.mxu0
      %v2214 = vadd.f32 %v2049, %v2213
      %v2215 = vpop.f32.mrf.mxu0
      %v2216 = vpop.f32.mrf.mxu0
      %v2217 = vadd.f32 %v2049, %v2216
      %v2218 = vpop.f32.mrf.mxu0
      %2219 = vmatprep.mubr.bf16.mxu0 0
      %2220 = vmatmul.mubr.bf16.gmra.mxu0 %v2023
      %v2221 = vpop.f32.mrf.mxu0
      %v2222 = vadd.f32 %v2049, %v2221
      %v2223 = vpop.f32.mrf.mxu0
      %v2224 = vpop.f32.mrf.mxu0
      %v2225 = vadd.f32 %v2049, %v2224
      %v2226 = vpop.f32.mrf.mxu0
      %2227 = vmatprep.mubr.bf16.mxu0 0
      %2228 = vmatmul.mubr.bf16.gmra.mxu0 %v2024
      %v2229 = vpop.f32.mrf.mxu0
      %v2230 = vadd.f32 %v2049, %v2229
      %v2231 = vpop.f32.mrf.mxu0
      %v2232 = vpop.f32.mrf.mxu0
      %v2233 = vadd.f32 %v2049, %v2232
      %v2234 = vpop.f32.mrf.mxu0
      %2235 = vmatprep.mubr.bf16.mxu0 0
      %2236 = vmatmul.mubr.bf16.gmra.mxu0 %v2025
      %v2237 = vpop.f32.mrf.mxu0
      %v2238 = vadd.f32 %v2049, %v2237
      %v2239 = vpop.f32.mrf.mxu0
      %v2240 = vpop.f32.mrf.mxu0
      %v2241 = vadd.f32 %v2049, %v2240
      %v2242 = vpop.f32.mrf.mxu0
      %2243 = vmatprep.mubr.bf16.mxu0 0
      %2244 = vmatmul.mubr.bf16.gmra.mxu0 %v2026
      %v2245 = vpop.f32.mrf.mxu0
      %v2246 = vadd.f32 %v2049, %v2245
      %v2247 = vpop.f32.mrf.mxu0
      %v2248 = vpop.f32.mrf.mxu0
      %v2249 = vadd.f32 %v2049, %v2248
      %v2250 = vpop.f32.mrf.mxu0
      %2251 = vmatprep.mubr.bf16.mxu0 0
      %2252 = vmatmul.mubr.bf16.gmra.mxu0 %v2027
      %v2253 = vpop.f32.mrf.mxu0
      %v2254 = vadd.f32 %v2049, %v2253
      %v2255 = vpop.f32.mrf.mxu0
      %v2256 = vpop.f32.mrf.mxu0
      %v2257 = vadd.f32 %v2049, %v2256
      %v2258 = vpop.f32.mrf.mxu0
      %2259 = vdwg.mxu0
      %s2260 = smul.u32 %s16, 256
      %s2261 = scalar_lea.vmem %s5, %s2260
      %2262 = vst [vmem:[%s2261] sm:$0xff] %v2134
      %2263 = vst [vmem:[%s2261 + $0x8] sm:$0xff] %v2137
      %2264 = vst [vmem:[%s2261 + $0x10] sm:$0xff] %v2142
      %2265 = vst [vmem:[%s2261 + $0x18] sm:$0xff] %v2145
      %2266 = vst [vmem:[%s2261 + $0x20] sm:$0xff] %v2150
      %2267 = vst [vmem:[%s2261 + $0x28] sm:$0xff] %v2153
      %2268 = vst [vmem:[%s2261 + $0x30] sm:$0xff] %v2158
      %2269 = vst [vmem:[%s2261 + $0x38] sm:$0xff] %v2161
      %2270 = vst [vmem:[%s2261 + $0x40] sm:$0xff] %v2166
      %2271 = vst [vmem:[%s2261 + $0x48] sm:$0xff] %v2169
      %2272 = vst [vmem:[%s2261 + $0x50] sm:$0xff] %v2174
      %2273 = vst [vmem:[%s2261 + $0x58] sm:$0xff] %v2177
      %2274 = vst [vmem:[%s2261 + $0x60] sm:$0xff] %v2182
      %2275 = vst [vmem:[%s2261 + $0x68] sm:$0xff] %v2185
      %2276 = vst [vmem:[%s2261 + $0x70] sm:$0xff] %v2190
      %2277 = vst [vmem:[%s2261 + $0x78] sm:$0xff] %v2193
      %2278 = vst [vmem:[%s2261 + $0x80] sm:$0xff] %v2198
      %2279 = vst [vmem:[%s2261 + $0x88] sm:$0xff] %v2201
      %2280 = vst [vmem:[%s2261 + $0x90] sm:$0xff] %v2206
      %2281 = vst [vmem:[%s2261 + $0x98] sm:$0xff] %v2209
      %2282 = vst [vmem:[%s2261 + $0xa0] sm:$0xff] %v2214
      %2283 = vst [vmem:[%s2261 + $0xa8] sm:$0xff] %v2217
      %2284 = vst [vmem:[%s2261 + $0xb0] sm:$0xff] %v2222
      %2285 = vst [vmem:[%s2261 + $0xb8] sm:$0xff] %v2225
      %2286 = vst [vmem:[%s2261 + $0xc0] sm:$0xff] %v2230
      %2287 = vst [vmem:[%s2261 + $0xc8] sm:$0xff] %v2233
      %2288 = vst [vmem:[%s2261 + $0xd0] sm:$0xff] %v2238
      %2289 = vst [vmem:[%s2261 + $0xd8] sm:$0xff] %v2241
      %2290 = vst [vmem:[%s2261 + $0xe0] sm:$0xff] %v2246
      %2291 = vst [vmem:[%s2261 + $0xe8] sm:$0xff] %v2249
      %2292 = vst [vmem:[%s2261 + $0xf0] sm:$0xff] %v2254
      %2293 = vst [vmem:[%s2261 + $0xf8] sm:$0xff] %v2257
      %v2294 = vld [vmem:[#allocation4] sm:$0x1]
      %v2295 = vadd.f32 %v2134, %v2137
      %v2296 = vadd.f32 %v2295, %v2142
      %v2297 = vadd.f32 %v2296, %v2145
      %v2298 = vadd.f32 %v2297, %v2150
      %v2299 = vadd.f32 %v2298, %v2153
      %v2300 = vadd.f32 %v2299, %v2158
      %v2301 = vadd.f32 %v2300, %v2161
      %v2302 = vadd.f32 %v2301, %v2166
      %v2303 = vadd.f32 %v2302, %v2169
      %v2304 = vadd.f32 %v2303, %v2174
      %v2305 = vadd.f32 %v2304, %v2177
      %v2306 = vadd.f32 %v2305, %v2182
      %v2307 = vadd.f32 %v2306, %v2185
      %v2308 = vadd.f32 %v2307, %v2190
      %v2309 = vadd.f32 %v2308, %v2193
      %v2310 = vadd.f32 %v2309, %v2198
      %v2311 = vadd.f32 %v2310, %v2201
      %v2312 = vadd.f32 %v2311, %v2206
      %v2313 = vadd.f32 %v2312, %v2209
      %v2314 = vadd.f32 %v2313, %v2214
      %v2315 = vadd.f32 %v2314, %v2217
      %v2316 = vadd.f32 %v2315, %v2222
      %v2317 = vadd.f32 %v2316, %v2225
      %v2318 = vadd.f32 %v2317, %v2230
      %v2319 = vadd.f32 %v2318, %v2233
      %v2320 = vadd.f32 %v2319, %v2238
      %v2321 = vadd.f32 %v2320, %v2241
      %v2322 = vadd.f32 %v2321, %v2246
      %v2323 = vadd.f32 %v2322, %v2249
      %v2324 = vadd.f32 %v2323, %v2254
      %v2325 = vadd.f32 %v2324, %v2257
      %v2326 = vrot.slane %v2325, 4
      %v2327 = vadd.f32 %v2325, %v2326
      %v2328 = vrot.slane %v2327, 2
      %v2329 = vadd.f32 %v2327, %v2328
      %v2330 = vrot.slane %v2329, 1
      %v2331 = vadd.f32 %v2329, %v2330
      %v2332 = vadd.f32 %v2294, %v2331
      %2333 = vst [vmem:[#allocation4] sm:$0x1] %v2332
      %v2334 = vld [vmem:[#allocation5] sm:$0x1]
      %v2335 = vmul.f32 %v2134, %v2134
      %v2336 = vmul.f32 %v2137, %v2137
      %v2337 = vmul.f32 %v2142, %v2142
      %v2338 = vmul.f32 %v2145, %v2145
      %v2339 = vmul.f32 %v2150, %v2150
      %v2340 = vmul.f32 %v2153, %v2153
      %v2341 = vmul.f32 %v2158, %v2158
      %v2342 = vmul.f32 %v2161, %v2161
      %v2343 = vmul.f32 %v2166, %v2166
      %v2344 = vmul.f32 %v2169, %v2169
      %v2345 = vmul.f32 %v2174, %v2174
      %v2346 = vmul.f32 %v2177, %v2177
      %v2347 = vmul.f32 %v2182, %v2182
      %v2348 = vmul.f32 %v2185, %v2185
      %v2349 = vmul.f32 %v2190, %v2190
      %v2350 = vmul.f32 %v2193, %v2193
      %v2351 = vmul.f32 %v2198, %v2198
      %v2352 = vmul.f32 %v2201, %v2201
      %v2353 = vmul.f32 %v2206, %v2206
      %v2354 = vmul.f32 %v2209, %v2209
      %v2355 = vmul.f32 %v2214, %v2214
      %v2356 = vmul.f32 %v2217, %v2217
      %v2357 = vmul.f32 %v2222, %v2222
      %v2358 = vmul.f32 %v2225, %v2225
      %v2359 = vmul.f32 %v2230, %v2230
      %v2360 = vmul.f32 %v2233, %v2233
      %v2361 = vmul.f32 %v2238, %v2238
      %v2362 = vmul.f32 %v2241, %v2241
      %v2363 = vmul.f32 %v2246, %v2246
      %v2364 = vmul.f32 %v2249, %v2249
      %v2365 = vmul.f32 %v2254, %v2254
      %v2366 = vmul.f32 %v2257, %v2257
      %v2367 = vadd.f32 %v2335, %v2336
      %v2368 = vadd.f32 %v2367, %v2337
      %v2369 = vadd.f32 %v2368, %v2338
      %v2370 = vadd.f32 %v2369, %v2339
      %v2371 = vadd.f32 %v2370, %v2340
      %v2372 = vadd.f32 %v2371, %v2341
      %v2373 = vadd.f32 %v2372, %v2342
      %v2374 = vadd.f32 %v2373, %v2343
      %v2375 = vadd.f32 %v2374, %v2344
      %v2376 = vadd.f32 %v2375, %v2345
      %v2377 = vadd.f32 %v2376, %v2346
      %v2378 = vadd.f32 %v2377, %v2347
      %v2379 = vadd.f32 %v2378, %v2348
      %v2380 = vadd.f32 %v2379, %v2349
      %v2381 = vadd.f32 %v2380, %v2350
      %v2382 = vadd.f32 %v2381, %v2351
      %v2383 = vadd.f32 %v2382, %v2352
      %v2384 = vadd.f32 %v2383, %v2353
      %v2385 = vadd.f32 %v2384, %v2354
      %v2386 = vadd.f32 %v2385, %v2355
      %v2387 = vadd.f32 %v2386, %v2356
      %v2388 = vadd.f32 %v2387, %v2357
      %v2389 = vadd.f32 %v2388, %v2358
      %v2390 = vadd.f32 %v2389, %v2359
      %v2391 = vadd.f32 %v2390, %v2360
      %v2392 = vadd.f32 %v2391, %v2361
      %v2393 = vadd.f32 %v2392, %v2362
      %v2394 = vadd.f32 %v2393, %v2363
      %v2395 = vadd.f32 %v2394, %v2364
      %v2396 = vadd.f32 %v2395, %v2365
      %v2397 = vadd.f32 %v2396, %v2366
      %v2398 = vrot.slane %v2397, 4
      %v2399 = vadd.f32 %v2397, %v2398
      %v2400 = vrot.slane %v2399, 2
      %v2401 = vadd.f32 %v2399, %v2400
      %v2402 = vrot.slane %v2401, 1
      %v2403 = vadd.f32 %v2401, %v2402
      %v2404 = vadd.f32 %v2334, %v2403
      %2405 = vst [vmem:[#allocation5] sm:$0x1] %v2404
      %p2406 = scmp.eq.s32.totalorder %s16, 1
      // Predicated region
      $region45: #{cnn_block_forward.1} parent=39 // pred_check
        %p2407 = pneg %p2406
      $region46: #{cnn_block_forward.1} parent=39 // pred_check_branch
        %2409 = sbr.rel (%p2407) target = $region48
      $region47: #{cnn_block_forward.1} parent=39 // pred_region
        %v2410 = vld [vmem:[#allocation4] sm:$0x1]
        %v2411 = vmul.f32 %v2410, 0.001953125
        %v2412 = vld [vmem:[#allocation5] sm:$0x1]
        %v2413 = vmul.f32 %v2412, 0.001953125
        %v2414 = vmul.f32 %v2411, %v2411
        %v2415 = vsub.f32 %v2413, %v2414
        %v2416 = vmax.f32 %v2415, 0.0
        %v2417 = vadd.f32 %v2416, 1e-05
        %v2418 = vrsqrt.pop %v2417
        %v2419 = vld [vmem:[%s3] sm:$0x1]
        %v2420 = vmul.f32 %v2419, %v2418
        %v2421 = vld [vmem:[%s4] sm:$0x1]
        %v2422 = vmul.f32 %v2411, %v2420
        %v2423 = vsub.f32 %v2421, %v2422
        %v2424 = vld [vmem:[%s5] sm:$0xff]
        %v2425 = vld [vmem:[%s5 + $0x8] sm:$0xff]
        %v2426 = vld [vmem:[%s5 + $0x10] sm:$0xff]
        %v2427 = vld [vmem:[%s5 + $0x18] sm:$0xff]
        %v2428 = vld [vmem:[%s5 + $0x20] sm:$0xff]
        %v2429 = vld [vmem:[%s5 + $0x28] sm:$0xff]
        %v2430 = vld [vmem:[%s5 + $0x30] sm:$0xff]
        %v2431 = vld [vmem:[%s5 + $0x38] sm:$0xff]
        %v2432 = vld [vmem:[%s5 + $0x40] sm:$0xff]
        %v2433 = vld [vmem:[%s5 + $0x48] sm:$0xff]
        %v2434 = vld [vmem:[%s5 + $0x50] sm:$0xff]
        %v2435 = vld [vmem:[%s5 + $0x58] sm:$0xff]
        %v2436 = vld [vmem:[%s5 + $0x60] sm:$0xff]
        %v2437 = vld [vmem:[%s5 + $0x68] sm:$0xff]
        %v2438 = vld [vmem:[%s5 + $0x70] sm:$0xff]
        %v2439 = vld [vmem:[%s5 + $0x78] sm:$0xff]
        %v2440 = vld [vmem:[%s5 + $0x80] sm:$0xff]
        %v2441 = vld [vmem:[%s5 + $0x88] sm:$0xff]
        %v2442 = vld [vmem:[%s5 + $0x90] sm:$0xff]
        %v2443 = vld [vmem:[%s5 + $0x98] sm:$0xff]
        %v2444 = vld [vmem:[%s5 + $0xa0] sm:$0xff]
        %v2445 = vld [vmem:[%s5 + $0xa8] sm:$0xff]
        %v2446 = vld [vmem:[%s5 + $0xb0] sm:$0xff]
        %v2447 = vld [vmem:[%s5 + $0xb8] sm:$0xff]
        %v2448 = vld [vmem:[%s5 + $0xc0] sm:$0xff]
        %v2449 = vld [vmem:[%s5 + $0xc8] sm:$0xff]
        %v2450 = vld [vmem:[%s5 + $0xd0] sm:$0xff]
        %v2451 = vld [vmem:[%s5 + $0xd8] sm:$0xff]
        %v2452 = vld [vmem:[%s5 + $0xe0] sm:$0xff]
        %v2453 = vld [vmem:[%s5 + $0xe8] sm:$0xff]
        %v2454 = vld [vmem:[%s5 + $0xf0] sm:$0xff]
        %v2455 = vld [vmem:[%s5 + $0xf8] sm:$0xff]
        %v2456 = vld [vmem:[%s5 + $0x100] sm:$0xff]
        %v2457 = vld [vmem:[%s5 + $0x108] sm:$0xff]
        %v2458 = vld [vmem:[%s5 + $0x110] sm:$0xff]
        %v2459 = vld [vmem:[%s5 + $0x118] sm:$0xff]
        %v2460 = vld [vmem:[%s5 + $0x120] sm:$0xff]
        %v2461 = vld [vmem:[%s5 + $0x128] sm:$0xff]
        %v2462 = vld [vmem:[%s5 + $0x130] sm:$0xff]
        %v2463 = vld [vmem:[%s5 + $0x138] sm:$0xff]
        %v2464 = vld [vmem:[%s5 + $0x140] sm:$0xff]
        %v2465 = vld [vmem:[%s5 + $0x148] sm:$0xff]
        %v2466 = vld [vmem:[%s5 + $0x150] sm:$0xff]
        %v2467 = vld [vmem:[%s5 + $0x158] sm:$0xff]
        %v2468 = vld [vmem:[%s5 + $0x160] sm:$0xff]
        %v2469 = vld [vmem:[%s5 + $0x168] sm:$0xff]
        %v2470 = vld [vmem:[%s5 + $0x170] sm:$0xff]
        %v2471 = vld [vmem:[%s5 + $0x178] sm:$0xff]
        %v2472 = vld [vmem:[%s5 + $0x180] sm:$0xff]
        %v2473 = vld [vmem:[%s5 + $0x188] sm:$0xff]
        %v2474 = vld [vmem:[%s5 + $0x190] sm:$0xff]
        %v2475 = vld [vmem:[%s5 + $0x198] sm:$0xff]
        %v2476 = vld [vmem:[%s5 + $0x1a0] sm:$0xff]
        %v2477 = vld [vmem:[%s5 + $0x1a8] sm:$0xff]
        %v2478 = vld [vmem:[%s5 + $0x1b0] sm:$0xff]
        %v2479 = vld [vmem:[%s5 + $0x1b8] sm:$0xff]
        %v2480 = vld [vmem:[%s5 + $0x1c0] sm:$0xff]
        %v2481 = vld [vmem:[%s5 + $0x1c8] sm:$0xff]
        %v2482 = vld [vmem:[%s5 + $0x1d0] sm:$0xff]
        %v2483 = vld [vmem:[%s5 + $0x1d8] sm:$0xff]
        %v2484 = vld [vmem:[%s5 + $0x1e0] sm:$0xff]
        %v2485 = vld [vmem:[%s5 + $0x1e8] sm:$0xff]
        %v2486 = vld [vmem:[%s5 + $0x1f0] sm:$0xff]
        %v2487 = vld [vmem:[%s5 + $0x1f8] sm:$0xff]
        %v2489 = vlaneseq
        %v2490 = vshrl.u32 %v2489, 7
        %v2491 = vsub.s32 0, %v2490
        %v2492 = vrot.slane %v2420, %v2491
        %v2494 = vmul.f32 %v2424, %v2492
        %v2495 = vmul.f32 %v2425, %v2492
        %v2496 = vmul.f32 %v2426, %v2492
        %v2497 = vmul.f32 %v2427, %v2492
        %v2498 = vmul.f32 %v2428, %v2492
        %v2499 = vmul.f32 %v2429, %v2492
        %v2500 = vmul.f32 %v2430, %v2492
        %v2501 = vmul.f32 %v2431, %v2492
        %v2502 = vmul.f32 %v2432, %v2492
        %v2503 = vmul.f32 %v2433, %v2492
        %v2504 = vmul.f32 %v2434, %v2492
        %v2505 = vmul.f32 %v2435, %v2492
        %v2506 = vmul.f32 %v2436, %v2492
        %v2507 = vmul.f32 %v2437, %v2492
        %v2508 = vmul.f32 %v2438, %v2492
        %v2509 = vmul.f32 %v2439, %v2492
        %v2510 = vmul.f32 %v2440, %v2492
        %v2511 = vmul.f32 %v2441, %v2492
        %v2512 = vmul.f32 %v2442, %v2492
        %v2513 = vmul.f32 %v2443, %v2492
        %v2514 = vmul.f32 %v2444, %v2492
        %v2515 = vmul.f32 %v2445, %v2492
        %v2516 = vmul.f32 %v2446, %v2492
        %v2517 = vmul.f32 %v2447, %v2492
        %v2518 = vmul.f32 %v2448, %v2492
        %v2519 = vmul.f32 %v2449, %v2492
        %v2520 = vmul.f32 %v2450, %v2492
        %v2521 = vmul.f32 %v2451, %v2492
        %v2522 = vmul.f32 %v2452, %v2492
        %v2523 = vmul.f32 %v2453, %v2492
        %v2524 = vmul.f32 %v2454, %v2492
        %v2525 = vmul.f32 %v2455, %v2492
        %v2526 = vmul.f32 %v2456, %v2492
        %v2527 = vmul.f32 %v2457, %v2492
        %v2528 = vmul.f32 %v2458, %v2492
        %v2529 = vmul.f32 %v2459, %v2492
        %v2530 = vmul.f32 %v2460, %v2492
        %v2531 = vmul.f32 %v2461, %v2492
        %v2532 = vmul.f32 %v2462, %v2492
        %v2533 = vmul.f32 %v2463, %v2492
        %v2534 = vmul.f32 %v2464, %v2492
        %v2535 = vmul.f32 %v2465, %v2492
        %v2536 = vmul.f32 %v2466, %v2492
        %v2537 = vmul.f32 %v2467, %v2492
        %v2538 = vmul.f32 %v2468, %v2492
        %v2539 = vmul.f32 %v2469, %v2492
        %v2540 = vmul.f32 %v2470, %v2492
        %v2541 = vmul.f32 %v2471, %v2492
        %v2542 = vmul.f32 %v2472, %v2492
        %v2543 = vmul.f32 %v2473, %v2492
        %v2544 = vmul.f32 %v2474, %v2492
        %v2545 = vmul.f32 %v2475, %v2492
        %v2546 = vmul.f32 %v2476, %v2492
        %v2547 = vmul.f32 %v2477, %v2492
        %v2548 = vmul.f32 %v2478, %v2492
        %v2549 = vmul.f32 %v2479, %v2492
        %v2550 = vmul.f32 %v2480, %v2492
        %v2551 = vmul.f32 %v2481, %v2492
        %v2552 = vmul.f32 %v2482, %v2492
        %v2553 = vmul.f32 %v2483, %v2492
        %v2554 = vmul.f32 %v2484, %v2492
        %v2555 = vmul.f32 %v2485, %v2492
        %v2556 = vmul.f32 %v2486, %v2492
        %v2557 = vmul.f32 %v2487, %v2492
        %v2559 = vlaneseq
        %v2560 = vshrl.u32 %v2559, 7
        %v2561 = vsub.s32 0, %v2560
        %v2562 = vrot.slane %v2423, %v2561
        %v2564 = vadd.f32 %v2494, %v2562
        %v2565 = vadd.f32 %v2495, %v2562
        %v2566 = vadd.f32 %v2496, %v2562
        %v2567 = vadd.f32 %v2497, %v2562
        %v2568 = vadd.f32 %v2498, %v2562
        %v2569 = vadd.f32 %v2499, %v2562
        %v2570 = vadd.f32 %v2500, %v2562
        %v2571 = vadd.f32 %v2501, %v2562
        %v2572 = vadd.f32 %v2502, %v2562
        %v2573 = vadd.f32 %v2503, %v2562
        %v2574 = vadd.f32 %v2504, %v2562
        %v2575 = vadd.f32 %v2505, %v2562
        %v2576 = vadd.f32 %v2506, %v2562
        %v2577 = vadd.f32 %v2507, %v2562
        %v2578 = vadd.f32 %v2508, %v2562
        %v2579 = vadd.f32 %v2509, %v2562
        %v2580 = vadd.f32 %v2510, %v2562
        %v2581 = vadd.f32 %v2511, %v2562
        %v2582 = vadd.f32 %v2512, %v2562
        %v2583 = vadd.f32 %v2513, %v2562
        %v2584 = vadd.f32 %v2514, %v2562
        %v2585 = vadd.f32 %v2515, %v2562
        %v2586 = vadd.f32 %v2516, %v2562
        %v2587 = vadd.f32 %v2517, %v2562
        %v2588 = vadd.f32 %v2518, %v2562
        %v2589 = vadd.f32 %v2519, %v2562
        %v2590 = vadd.f32 %v2520, %v2562
        %v2591 = vadd.f32 %v2521, %v2562
        %v2592 = vadd.f32 %v2522, %v2562
        %v2593 = vadd.f32 %v2523, %v2562
        %v2594 = vadd.f32 %v2524, %v2562
        %v2595 = vadd.f32 %v2525, %v2562
        %v2596 = vadd.f32 %v2526, %v2562
        %v2597 = vadd.f32 %v2527, %v2562
        %v2598 = vadd.f32 %v2528, %v2562
        %v2599 = vadd.f32 %v2529, %v2562
        %v2600 = vadd.f32 %v2530, %v2562
        %v2601 = vadd.f32 %v2531, %v2562
        %v2602 = vadd.f32 %v2532, %v2562
        %v2603 = vadd.f32 %v2533, %v2562
        %v2604 = vadd.f32 %v2534, %v2562
        %v2605 = vadd.f32 %v2535, %v2562
        %v2606 = vadd.f32 %v2536, %v2562
        %v2607 = vadd.f32 %v2537, %v2562
        %v2608 = vadd.f32 %v2538, %v2562
        %v2609 = vadd.f32 %v2539, %v2562
        %v2610 = vadd.f32 %v2540, %v2562
        %v2611 = vadd.f32 %v2541, %v2562
        %v2612 = vadd.f32 %v2542, %v2562
        %v2613 = vadd.f32 %v2543, %v2562
        %v2614 = vadd.f32 %v2544, %v2562
        %v2615 = vadd.f32 %v2545, %v2562
        %v2616 = vadd.f32 %v2546, %v2562
        %v2617 = vadd.f32 %v2547, %v2562
        %v2618 = vadd.f32 %v2548, %v2562
        %v2619 = vadd.f32 %v2549, %v2562
        %v2620 = vadd.f32 %v2550, %v2562
        %v2621 = vadd.f32 %v2551, %v2562
        %v2622 = vadd.f32 %v2552, %v2562
        %v2623 = vadd.f32 %v2553, %v2562
        %v2624 = vadd.f32 %v2554, %v2562
        %v2625 = vadd.f32 %v2555, %v2562
        %v2626 = vadd.f32 %v2556, %v2562
        %v2627 = vadd.f32 %v2557, %v2562
        %v2628 = vmax.f32 %v2564, 0.0
        %v2629 = vmax.f32 %v2565, 0.0
        %v2630 = vmax.f32 %v2566, 0.0
        %v2631 = vmax.f32 %v2567, 0.0
        %v2632 = vmax.f32 %v2568, 0.0
        %v2633 = vmax.f32 %v2569, 0.0
        %v2634 = vmax.f32 %v2570, 0.0
        %v2635 = vmax.f32 %v2571, 0.0
        %v2636 = vmax.f32 %v2572, 0.0
        %v2637 = vmax.f32 %v2573, 0.0
        %v2638 = vmax.f32 %v2574, 0.0
        %v2639 = vmax.f32 %v2575, 0.0
        %v2640 = vmax.f32 %v2576, 0.0
        %v2641 = vmax.f32 %v2577, 0.0
        %v2642 = vmax.f32 %v2578, 0.0
        %v2643 = vmax.f32 %v2579, 0.0
        %v2644 = vmax.f32 %v2580, 0.0
        %v2645 = vmax.f32 %v2581, 0.0
        %v2646 = vmax.f32 %v2582, 0.0
        %v2647 = vmax.f32 %v2583, 0.0
        %v2648 = vmax.f32 %v2584, 0.0
        %v2649 = vmax.f32 %v2585, 0.0
        %v2650 = vmax.f32 %v2586, 0.0
        %v2651 = vmax.f32 %v2587, 0.0
        %v2652 = vmax.f32 %v2588, 0.0
        %v2653 = vmax.f32 %v2589, 0.0
        %v2654 = vmax.f32 %v2590, 0.0
        %v2655 = vmax.f32 %v2591, 0.0
        %v2656 = vmax.f32 %v2592, 0.0
        %v2657 = vmax.f32 %v2593, 0.0
        %v2658 = vmax.f32 %v2594, 0.0
        %v2659 = vmax.f32 %v2595, 0.0
        %v2660 = vmax.f32 %v2596, 0.0
        %v2661 = vmax.f32 %v2597, 0.0
        %v2662 = vmax.f32 %v2598, 0.0
        %v2663 = vmax.f32 %v2599, 0.0
        %v2664 = vmax.f32 %v2600, 0.0
        %v2665 = vmax.f32 %v2601, 0.0
        %v2666 = vmax.f32 %v2602, 0.0
        %v2667 = vmax.f32 %v2603, 0.0
        %v2668 = vmax.f32 %v2604, 0.0
        %v2669 = vmax.f32 %v2605, 0.0
        %v2670 = vmax.f32 %v2606, 0.0
        %v2671 = vmax.f32 %v2607, 0.0
        %v2672 = vmax.f32 %v2608, 0.0
        %v2673 = vmax.f32 %v2609, 0.0
        %v2674 = vmax.f32 %v2610, 0.0
        %v2675 = vmax.f32 %v2611, 0.0
        %v2676 = vmax.f32 %v2612, 0.0
        %v2677 = vmax.f32 %v2613, 0.0
        %v2678 = vmax.f32 %v2614, 0.0
        %v2679 = vmax.f32 %v2615, 0.0
        %v2680 = vmax.f32 %v2616, 0.0
        %v2681 = vmax.f32 %v2617, 0.0
        %v2682 = vmax.f32 %v2618, 0.0
        %v2683 = vmax.f32 %v2619, 0.0
        %v2684 = vmax.f32 %v2620, 0.0
        %v2685 = vmax.f32 %v2621, 0.0
        %v2686 = vmax.f32 %v2622, 0.0
        %v2687 = vmax.f32 %v2623, 0.0
        %v2688 = vmax.f32 %v2624, 0.0
        %v2689 = vmax.f32 %v2625, 0.0
        %v2690 = vmax.f32 %v2626, 0.0
        %v2691 = vmax.f32 %v2627, 0.0
        %2692 = vst [vmem:[%s5] sm:$0xff] %v2628
        %2693 = vst [vmem:[%s5 + $0x8] sm:$0xff] %v2629
        %2694 = vst [vmem:[%s5 + $0x10] sm:$0xff] %v2630
        %2695 = vst [vmem:[%s5 + $0x18] sm:$0xff] %v2631
        %2696 = vst [vmem:[%s5 + $0x20] sm:$0xff] %v2632
        %2697 = vst [vmem:[%s5 + $0x28] sm:$0xff] %v2633
        %2698 = vst [vmem:[%s5 + $0x30] sm:$0xff] %v2634
        %2699 = vst [vmem:[%s5 + $0x38] sm:$0xff] %v2635
        %2700 = vst [vmem:[%s5 + $0x40] sm:$0xff] %v2636
        %2701 = vst [vmem:[%s5 + $0x48] sm:$0xff] %v2637
        %2702 = vst [vmem:[%s5 + $0x50] sm:$0xff] %v2638
        %2703 = vst [vmem:[%s5 + $0x58] sm:$0xff] %v2639
        %2704 = vst [vmem:[%s5 + $0x60] sm:$0xff] %v2640
        %2705 = vst [vmem:[%s5 + $0x68] sm:$0xff] %v2641
        %2706 = vst [vmem:[%s5 + $0x70] sm:$0xff] %v2642
        %2707 = vst [vmem:[%s5 + $0x78] sm:$0xff] %v2643
        %2708 = vst [vmem:[%s5 + $0x80] sm:$0xff] %v2644
        %2709 = vst [vmem:[%s5 + $0x88] sm:$0xff] %v2645
        %2710 = vst [vmem:[%s5 + $0x90] sm:$0xff] %v2646
        %2711 = vst [vmem:[%s5 + $0x98] sm:$0xff] %v2647
        %2712 = vst [vmem:[%s5 + $0xa0] sm:$0xff] %v2648
        %2713 = vst [vmem:[%s5 + $0xa8] sm:$0xff] %v2649
        %2714 = vst [vmem:[%s5 + $0xb0] sm:$0xff] %v2650
        %2715 = vst [vmem:[%s5 + $0xb8] sm:$0xff] %v2651
        %2716 = vst [vmem:[%s5 + $0xc0] sm:$0xff] %v2652
        %2717 = vst [vmem:[%s5 + $0xc8] sm:$0xff] %v2653
        %2718 = vst [vmem:[%s5 + $0xd0] sm:$0xff] %v2654
        %2719 = vst [vmem:[%s5 + $0xd8] sm:$0xff] %v2655
        %2720 = vst [vmem:[%s5 + $0xe0] sm:$0xff] %v2656
        %2721 = vst [vmem:[%s5 + $0xe8] sm:$0xff] %v2657
        %2722 = vst [vmem:[%s5 + $0xf0] sm:$0xff] %v2658
        %2723 = vst [vmem:[%s5 + $0xf8] sm:$0xff] %v2659
        %2724 = vst [vmem:[%s5 + $0x100] sm:$0xff] %v2660
        %2725 = vst [vmem:[%s5 + $0x108] sm:$0xff] %v2661
        %2726 = vst [vmem:[%s5 + $0x110] sm:$0xff] %v2662
        %2727 = vst [vmem:[%s5 + $0x118] sm:$0xff] %v2663
        %2728 = vst [vmem:[%s5 + $0x120] sm:$0xff] %v2664
        %2729 = vst [vmem:[%s5 + $0x128] sm:$0xff] %v2665
        %2730 = vst [vmem:[%s5 + $0x130] sm:$0xff] %v2666
        %2731 = vst [vmem:[%s5 + $0x138] sm:$0xff] %v2667
        %2732 = vst [vmem:[%s5 + $0x140] sm:$0xff] %v2668
        %2733 = vst [vmem:[%s5 + $0x148] sm:$0xff] %v2669
        %2734 = vst [vmem:[%s5 + $0x150] sm:$0xff] %v2670
        %2735 = vst [vmem:[%s5 + $0x158] sm:$0xff] %v2671
        %2736 = vst [vmem:[%s5 + $0x160] sm:$0xff] %v2672
        %2737 = vst [vmem:[%s5 + $0x168] sm:$0xff] %v2673
        %2738 = vst [vmem:[%s5 + $0x170] sm:$0xff] %v2674
        %2739 = vst [vmem:[%s5 + $0x178] sm:$0xff] %v2675
        %2740 = vst [vmem:[%s5 + $0x180] sm:$0xff] %v2676
        %2741 = vst [vmem:[%s5 + $0x188] sm:$0xff] %v2677
        %2742 = vst [vmem:[%s5 + $0x190] sm:$0xff] %v2678
        %2743 = vst [vmem:[%s5 + $0x198] sm:$0xff] %v2679
        %2744 = vst [vmem:[%s5 + $0x1a0] sm:$0xff] %v2680
        %2745 = vst [vmem:[%s5 + $0x1a8] sm:$0xff] %v2681
        %2746 = vst [vmem:[%s5 + $0x1b0] sm:$0xff] %v2682
        %2747 = vst [vmem:[%s5 + $0x1b8] sm:$0xff] %v2683
        %2748 = vst [vmem:[%s5 + $0x1c0] sm:$0xff] %v2684
        %2749 = vst [vmem:[%s5 + $0x1c8] sm:$0xff] %v2685
        %2750 = vst [vmem:[%s5 + $0x1d0] sm:$0xff] %v2686
        %2751 = vst [vmem:[%s5 + $0x1d8] sm:$0xff] %v2687
        %2752 = vst [vmem:[%s5 + $0x1e0] sm:$0xff] %v2688
        %2753 = vst [vmem:[%s5 + $0x1e8] sm:$0xff] %v2689
        %2754 = vst [vmem:[%s5 + $0x1f0] sm:$0xff] %v2690
        %2755 = vst [vmem:[%s5 + $0x1f8] sm:$0xff] %v2691
      $region48: #{cnn_block_forward.1} parent=39 // pred_fallthru
        _
      // Predicated region
      $region49: #{cnn_block_forward.1} parent=39 // pred_check
        %p2756 = pneg %p139
      $region50: #{cnn_block_forward.1} parent=39 // pred_check_branch
        %2758 = sbr.rel (%p2756) target = $region52
      $region51: #{cnn_block_forward.1} parent=39 // pred_region
        _
      $region52: #{cnn_block_forward.1} parent=39 // pred_fallthru
        _
      // Predicated region
      $region53: #{cnn_block_forward.1} parent=39 // pred_check
        %p2759 = pneg %p139
      $region54: #{cnn_block_forward.1} parent=39 // pred_check_branch
        %2761 = sbr.rel (%p2759) target = $region56
      $region55: #{cnn_block_forward.1} parent=39 // pred_region
        _
      $region56: #{cnn_block_forward.1} parent=39 // pred_fallthru
        _
    $region40: #{cnn_block_forward.1} parent=5 // pred_fallthru
      _
    %p2762 = scmp.le.s32.totalorder 2, %s11
    // Predicated region
    $region57: #{cnn_block_forward.1} parent=5 // pred_check
      %p2763 = pneg %p2762
    $region58: #{cnn_block_forward.1} parent=5 // pred_check_branch
      %2765 = sbr.rel (%p2763) target = $region60
    $region59: #{cnn_block_forward.1} parent=5 // pred_region
      %s2766 = ssub.s32 %s11, 2
    $region60: #{cnn_block_forward.1} parent=5 // pred_fallthru
      _
  $region6: #{cnn_block_forward.1} parent=0 // loop_footer
    %s15 = sadd.s32 1, %s11
  $region7: #{cnn_block_forward.1} parent=0 // loop_footer_branch
    %10 = sbr.rel target = $region3
  $region8: #{cnn_block_forward.1} parent=0 // loop_exit
    _

</llo_original>
